<compile_context>
chip_gen: v7x
topology: tpu7x:2x2x1
jax: 0.10.0
libtpu: 0.0.40
codegen_flags: <defaults>
</compile_context>

<pallas_src>
import jax
import jax.numpy as jnp
from jax.experimental import pallas as pl
from jax.experimental.pallas import tpu as pltpu


LANES = 128  # lane width of a vreg; pixel axis maps here.


def _make_kernel(channel_counts, num_classes):
    """Kernel for a static branch/channel/class configuration.

    Refs per grid step:
        wb  : SMEM (K, sum_C + 1)  -- per class: all branch weights (scaled by
                                      1/num_branches) followed by the folded bias.
        x_f : (1, C_f, TR, 128)    -- pixel tile of branch f (dense planes).
        o   : (1, K, TR, 128)      -- softmax probabilities for this tile.
    """
    nf = len(channel_counts)
    K = num_classes

    def kernel(wb_ref, *refs):
        x_refs = refs[:nf]
        o_ref = refs[nf]

        # ---- 1x1 conv, mean over branches folded into wb --------------------
        # logits[k] = sum over (branch, channel) of w[k,col] * x_plane
        # Each x_plane is a dense (TR, 128) tile -> pure full-vreg VPU MACs.
        logits = []
        for k in range(K):
            col = 0
            acc = None
            for f in range(nf):
                for c in range(channel_counts[f]):
                    w_kc = wb_ref[k, col]                      # f32 scalar (SMEM)
                    plane = x_refs[f][0, c].astype(jnp.float32)  # (TR, 128)
                    term = plane * w_kc
                    acc = term if acc is None else acc + term
                    col += 1
            logits.append(acc + wb_ref[k, col])                # folded bias

        # ---- softmax across the K class planes (elementwise, no XLU reduce) -
        m = logits[0]
        for k in range(1, K):
            m = jnp.maximum(m, logits[k])
        # f32 exp everywhere (v5e EUP has no bf16); on v6e/v7x a bf16 exp would
        # roughly halve EUP time but the EUP is not the binding unit here.
        es = [jnp.exp(logits[k] - m) for k in range(K)]
        denom = es[0]
        for k in range(1, K):
            denom = denom + es[k]
        inv = pl.reciprocal(denom)        # exact: probabilities sum to 1
        for k in range(K):
            o_ref[0, k] = (es[k] * inv).astype(o_ref.dtype)

    return kernel


def _pick_tile_rows(rows: int, batch: int, *, max_rows: int = 256) -> int:
    """Rows (of 128 pixels) per grid step.

    256 rows = 32K pixels (~2 MB/step at these channel counts) amortizes the
    ~0.35 us grid-step overhead while staying far under the VMEM scoped
    defaults.  Shrink only to keep >= ~16 total grid steps so both v7x
    TensorCores (dimension_semantics="parallel") get pipelined work.
    """
    if rows <= max_rows:
        return rows
    tr = max_rows
    while tr > 8 and batch * pl.cdiv(rows, tr) < 16:
        tr //= 2
    return max(8, tr)


def deep_supervision_forward(features, weights, biases, num_classes,
                             *, out_dtype=None, max_tile_rows=256):
    """Eval-mode forward of the DeepSupervision head.

    features[i]: (N, C_i, H, W)  NCHW, same N/H/W across branches.
    weights[i]:  (K, C_i) or PyTorch Conv2d layout (K, C_i, 1, 1).
    biases[i]:   (K,)
    Returns softmax probabilities (N, K, H, W) in `out_dtype` (defaults to the
    feature dtype; pass jnp.bfloat16 to halve output HBM traffic).
    """
    nf = len(features)
    assert nf == len(weights) == len(biases) and nf >= 1
    N, _, H, W = features[0].shape
    K = int(num_classes)
    HW = H * W
    if out_dtype is None:
        out_dtype = features[0].dtype

    channel_counts = tuple(int(f.shape[1]) for f in features)

    # One tiny SMEM table: per class, all branch weights then the combined
    # bias, with the 1/nf "mean over branches" folded in.  Shape (K, sum_C+1).
    inv_n = jnp.float32(1.0 / float(nf))
    wb = jnp.concatenate(
        [jnp.asarray(w, jnp.float32).reshape(K, -1) for w in weights]
        + [sum(jnp.asarray(b, jnp.float32) for b in biases).reshape(K, 1)],
        axis=1,
    ) * inv_n

    # NCHW -> (N, C_i, rows, 128): contiguous reshape (zero-pad the pixel tail
    # when H*W is not a multiple of 128; padded pixels are sliced off below).
    rows = pl.cdiv(HW, LANES)
    hw_pad = rows * LANES
    x4 = []
    for f in features:
        xf = f.reshape(N, f.shape[1], HW)
        if hw_pad != HW:
            xf = jnp.pad(xf, ((0, 0), (0, 0), (0, hw_pad - HW)))
        x4.append(xf.reshape(N, f.shape[1], rows, LANES))

    tile_rows = _pick_tile_rows(rows, N, max_rows=max_tile_rows)
    grid = (N, pl.cdiv(rows, tile_rows))

    in_specs = [pl.BlockSpec(memory_space=pltpu.MemorySpace.SMEM)]  # wb table
    for c_i in channel_counts:
        in_specs.append(
            pl.BlockSpec((1, c_i, tile_rows, LANES), lambda n, r: (n, 0, r, 0))
        )
    out_spec = pl.BlockSpec((1, K, tile_rows, LANES), lambda n, r: (n, 0, r, 0))

    # VMEM at the default tile: ~2 MB in + <1 MB out per step, double-buffered
    # well under the scoped defaults on v5e/v6e/v7x, so no explicit
    # vmem_limit_bytes is needed unless tiles / branch count grow.
    out = pl.pallas_call(
        _make_kernel(channel_counts, K),
        out_shape=jax.ShapeDtypeStruct((N, K, rows, LANES), out_dtype),
        grid_spec=pltpu.PrefetchScalarGridSpec(
            num_scalar_prefetch=0,
            grid=grid,
            in_specs=in_specs,
            out_specs=out_spec,
        ),
        compiler_params=pltpu.CompilerParams(
            dimension_semantics=("parallel", "parallel"),
        ),
    )(wb, *x4)

    out = out.reshape(N, K, hw_pad)
    if hw_pad != HW:
        out = out[:, :, :HW]
    return out.reshape(N, K, H, W)


def reference_forward(features, weights, biases, num_classes):
    """Pure-JAX reference mirroring the PyTorch forward (eval mode)."""
    preds = []
    for f, w, b in zip(features, weights, biases):
        w2 = jnp.asarray(w, jnp.float32).reshape(num_classes, -1)
        y = jnp.einsum("nchw,kc->nkhw", f.astype(jnp.float32), w2)
        y = y + b[None, :, None, None]
        preds.append(y)
    pred = sum(preds) / len(preds)
    return jax.nn.softmax(pred, axis=1)


if __name__ == "__main__":
    key = jax.random.PRNGKey(0)

    # Two deep-supervision branches, 5 classes.
    in_channels = [4, 8]
    num_classes = 5
    N, H, W = 2, 16, 16

    features, weights, biases = [], [], []
    for i, c in enumerate(in_channels):
        kf, kw, kb = jax.random.split(jax.random.fold_in(key, i), 3)
        features.append(jax.random.normal(kf, (N, c, H, W), dtype=jnp.float32))
        # PyTorch Conv2d(c, K, kernel_size=1) weight layout: (K, C, 1, 1).
        weights.append(
            0.1 * jax.random.normal(kw, (num_classes, c, 1, 1), dtype=jnp.float32)
        )
        biases.append(
            0.01 * jax.random.normal(kb, (num_classes,), dtype=jnp.float32)
        )

    # f32 output: exact match against the reference.
    out = deep_supervision_forward(features, weights, biases, num_classes)
    out = jax.block_until_ready(out)

    ref = reference_forward(features, weights, biases, num_classes)
    assert out.shape == (N, num_classes, H, W)
    assert jnp.allclose(out, ref, atol=1e-4, rtol=1e-4)
    assert jnp.allclose(out.sum(axis=1), 1.0, atol=1e-4)

    # bf16 output path (halves the output's share of HBM traffic).
    out_bf16 = deep_supervision_forward(
        features, weights, biases, num_classes, out_dtype=jnp.bfloat16
    )
    out_bf16 = jax.block_until_ready(out_bf16)
    assert jnp.allclose(out_bf16.astype(jnp.float32), ref, atol=2e-2, rtol=2e-2)

    # TODO(synk): training branch (CrossEntropy_DiceLoss) is not implemented;
    # this kernel covers the eval/softmax path only.
    print("KERNEL_OK")
</pallas_src>

<mosaic_0001>
module attributes {stable_mosaic.version = 11 : i64} {
  func.func @kernel(%arg0: i32, %arg1: i32, %arg2: memref<5x13xf32, #tpu.memory_space<smem>>, %arg3: memref<1x4x2x128xf32, #tpu.memory_space<vmem>>, %arg4: memref<1x8x2x128xf32, #tpu.memory_space<vmem>>, %arg5: memref<1x5x2x128xf32, #tpu.memory_space<vmem>>) attributes {dimension_semantics = [#tpu.dimension_semantics<parallel>, #tpu.dimension_semantics<parallel>], iteration_bounds = array<i64: 2, 1>, scalar_prefetch = 0 : i64, scratch_operands = 0 : i64, tpu.core_type = #tpu.core_type<tc>, window_params = [{transform_indices = @transform_0, window_bounds = array<i64: 5, 13>}, {transform_indices = @transform_1, window_bounds = array<i64: 1, 4, 2, 128>}, {transform_indices = @transform_2, window_bounds = array<i64: 1, 8, 2, 128>}, {transform_indices = @transform_3, window_bounds = array<i64: 1, 5, 2, 128>}]} {
    %c0 = arith.constant 0 : index
    %c0_0 = arith.constant 0 : index
    %0 = memref.load %arg2[%c0, %c0_0] : memref<5x13xf32, #tpu.memory_space<smem>>
    %c0_1 = arith.constant 0 : index
    %c0_2 = arith.constant 0 : index
    %c0_3 = arith.constant 0 : index
    %c0_4 = arith.constant 0 : index
    %1 = vector.load %arg3[%c0_1, %c0_2, %c0_3, %c0_4] : memref<1x4x2x128xf32, #tpu.memory_space<vmem>>, vector<1x1x2x128xf32>
    %2 = vector.shape_cast %1 : vector<1x1x2x128xf32> to vector<2x128xf32>
    %3 = vector.broadcast %0 : f32 to vector<2x128xf32>
    %4 = arith.mulf %2, %3 : vector<2x128xf32>
    %c0_5 = arith.constant 0 : index
    %c1 = arith.constant 1 : index
    %5 = memref.load %arg2[%c0_5, %c1] : memref<5x13xf32, #tpu.memory_space<smem>>
    %c0_6 = arith.constant 0 : index
    %c1_7 = arith.constant 1 : index
    %c0_8 = arith.constant 0 : index
    %c0_9 = arith.constant 0 : index
    %6 = vector.load %arg3[%c0_6, %c1_7, %c0_8, %c0_9] : memref<1x4x2x128xf32, #tpu.memory_space<vmem>>, vector<1x1x2x128xf32>
    %7 = vector.shape_cast %6 : vector<1x1x2x128xf32> to vector<2x128xf32>
    %8 = vector.broadcast %5 : f32 to vector<2x128xf32>
    %9 = arith.mulf %7, %8 : vector<2x128xf32>
    %10 = arith.addf %4, %9 : vector<2x128xf32>
    %c0_10 = arith.constant 0 : index
    %c2 = arith.constant 2 : index
    %11 = memref.load %arg2[%c0_10, %c2] : memref<5x13xf32, #tpu.memory_space<smem>>
    %c0_11 = arith.constant 0 : index
    %c2_12 = arith.constant 2 : index
    %c0_13 = arith.constant 0 : index
    %c0_14 = arith.constant 0 : index
    %12 = vector.load %arg3[%c0_11, %c2_12, %c0_13, %c0_14] : memref<1x4x2x128xf32, #tpu.memory_space<vmem>>, vector<1x1x2x128xf32>
    %13 = vector.shape_cast %12 : vector<1x1x2x128xf32> to vector<2x128xf32>
    %14 = vector.broadcast %11 : f32 to vector<2x128xf32>
    %15 = arith.mulf %13, %14 : vector<2x128xf32>
    %16 = arith.addf %10, %15 : vector<2x128xf32>
    %c0_15 = arith.constant 0 : index
    %c3 = arith.constant 3 : index
    %17 = memref.load %arg2[%c0_15, %c3] : memref<5x13xf32, #tpu.memory_space<smem>>
    %c0_16 = arith.constant 0 : index
    %c3_17 = arith.constant 3 : index
    %c0_18 = arith.constant 0 : index
    %c0_19 = arith.constant 0 : index
    %18 = vector.load %arg3[%c0_16, %c3_17, %c0_18, %c0_19] : memref<1x4x2x128xf32, #tpu.memory_space<vmem>>, vector<1x1x2x128xf32>
    %19 = vector.shape_cast %18 : vector<1x1x2x128xf32> to vector<2x128xf32>
    %20 = vector.broadcast %17 : f32 to vector<2x128xf32>
    %21 = arith.mulf %19, %20 : vector<2x128xf32>
    %22 = arith.addf %16, %21 : vector<2x128xf32>
    %c0_20 = arith.constant 0 : index
    %c4 = arith.constant 4 : index
    %23 = memref.load %arg2[%c0_20, %c4] : memref<5x13xf32, #tpu.memory_space<smem>>
    %c0_21 = arith.constant 0 : index
    %c0_22 = arith.constant 0 : index
    %c0_23 = arith.constant 0 : index
    %c0_24 = arith.constant 0 : index
    %24 = vector.load %arg4[%c0_21, %c0_22, %c0_23, %c0_24] : memref<1x8x2x128xf32, #tpu.memory_space<vmem>>, vector<1x1x2x128xf32>
    %25 = vector.shape_cast %24 : vector<1x1x2x128xf32> to vector<2x128xf32>
    %26 = vector.broadcast %23 : f32 to vector<2x128xf32>
    %27 = arith.mulf %25, %26 : vector<2x128xf32>
    %28 = arith.addf %22, %27 : vector<2x128xf32>
    %c0_25 = arith.constant 0 : index
    %c5 = arith.constant 5 : index
    %29 = memref.load %arg2[%c0_25, %c5] : memref<5x13xf32, #tpu.memory_space<smem>>
    %c0_26 = arith.constant 0 : index
    %c1_27 = arith.constant 1 : index
    %c0_28 = arith.constant 0 : index
    %c0_29 = arith.constant 0 : index
    %30 = vector.load %arg4[%c0_26, %c1_27, %c0_28, %c0_29] : memref<1x8x2x128xf32, #tpu.memory_space<vmem>>, vector<1x1x2x128xf32>
    %31 = vector.shape_cast %30 : vector<1x1x2x128xf32> to vector<2x128xf32>
    %32 = vector.broadcast %29 : f32 to vector<2x128xf32>
    %33 = arith.mulf %31, %32 : vector<2x128xf32>
    %34 = arith.addf %28, %33 : vector<2x128xf32>
    %c0_30 = arith.constant 0 : index
    %c6 = arith.constant 6 : index
    %35 = memref.load %arg2[%c0_30, %c6] : memref<5x13xf32, #tpu.memory_space<smem>>
    %c0_31 = arith.constant 0 : index
    %c2_32 = arith.constant 2 : index
    %c0_33 = arith.constant 0 : index
    %c0_34 = arith.constant 0 : index
    %36 = vector.load %arg4[%c0_31, %c2_32, %c0_33, %c0_34] : memref<1x8x2x128xf32, #tpu.memory_space<vmem>>, vector<1x1x2x128xf32>
    %37 = vector.shape_cast %36 : vector<1x1x2x128xf32> to vector<2x128xf32>
    %38 = vector.broadcast %35 : f32 to vector<2x128xf32>
    %39 = arith.mulf %37, %38 : vector<2x128xf32>
    %40 = arith.addf %34, %39 : vector<2x128xf32>
    %c0_35 = arith.constant 0 : index
    %c7 = arith.constant 7 : index
    %41 = memref.load %arg2[%c0_35, %c7] : memref<5x13xf32, #tpu.memory_space<smem>>
    %c0_36 = arith.constant 0 : index
    %c3_37 = arith.constant 3 : index
    %c0_38 = arith.constant 0 : index
    %c0_39 = arith.constant 0 : index
    %42 = vector.load %arg4[%c0_36, %c3_37, %c0_38, %c0_39] : memref<1x8x2x128xf32, #tpu.memory_space<vmem>>, vector<1x1x2x128xf32>
    %43 = vector.shape_cast %42 : vector<1x1x2x128xf32> to vector<2x128xf32>
    %44 = vector.broadcast %41 : f32 to vector<2x128xf32>
    %45 = arith.mulf %43, %44 : vector<2x128xf32>
    %46 = arith.addf %40, %45 : vector<2x128xf32>
    %c0_40 = arith.constant 0 : index
    %c8 = arith.constant 8 : index
    %47 = memref.load %arg2[%c0_40, %c8] : memref<5x13xf32, #tpu.memory_space<smem>>
    %c0_41 = arith.constant 0 : index
    %c4_42 = arith.constant 4 : index
    %c0_43 = arith.constant 0 : index
    %c0_44 = arith.constant 0 : index
    %48 = vector.load %arg4[%c0_41, %c4_42, %c0_43, %c0_44] : memref<1x8x2x128xf32, #tpu.memory_space<vmem>>, vector<1x1x2x128xf32>
    %49 = vector.shape_cast %48 : vector<1x1x2x128xf32> to vector<2x128xf32>
    %50 = vector.broadcast %47 : f32 to vector<2x128xf32>
    %51 = arith.mulf %49, %50 : vector<2x128xf32>
    %52 = arith.addf %46, %51 : vector<2x128xf32>
    %c0_45 = arith.constant 0 : index
    %c9 = arith.constant 9 : index
    %53 = memref.load %arg2[%c0_45, %c9] : memref<5x13xf32, #tpu.memory_space<smem>>
    %c0_46 = arith.constant 0 : index
    %c5_47 = arith.constant 5 : index
    %c0_48 = arith.constant 0 : index
    %c0_49 = arith.constant 0 : index
    %54 = vector.load %arg4[%c0_46, %c5_47, %c0_48, %c0_49] : memref<1x8x2x128xf32, #tpu.memory_space<vmem>>, vector<1x1x2x128xf32>
    %55 = vector.shape_cast %54 : vector<1x1x2x128xf32> to vector<2x128xf32>
    %56 = vector.broadcast %53 : f32 to vector<2x128xf32>
    %57 = arith.mulf %55, %56 : vector<2x128xf32>
    %58 = arith.addf %52, %57 : vector<2x128xf32>
    %c0_50 = arith.constant 0 : index
    %c10 = arith.constant 10 : index
    %59 = memref.load %arg2[%c0_50, %c10] : memref<5x13xf32, #tpu.memory_space<smem>>
    %c0_51 = arith.constant 0 : index
    %c6_52 = arith.constant 6 : index
    %c0_53 = arith.constant 0 : index
    %c0_54 = arith.constant 0 : index
    %60 = vector.load %arg4[%c0_51, %c6_52, %c0_53, %c0_54] : memref<1x8x2x128xf32, #tpu.memory_space<vmem>>, vector<1x1x2x128xf32>
    %61 = vector.shape_cast %60 : vector<1x1x2x128xf32> to vector<2x128xf32>
    %62 = vector.broadcast %59 : f32 to vector<2x128xf32>
    %63 = arith.mulf %61, %62 : vector<2x128xf32>
    %64 = arith.addf %58, %63 : vector<2x128xf32>
    %c0_55 = arith.constant 0 : index
    %c11 = arith.constant 11 : index
    %65 = memref.load %arg2[%c0_55, %c11] : memref<5x13xf32, #tpu.memory_space<smem>>
    %c0_56 = arith.constant 0 : index
    %c7_57 = arith.constant 7 : index
    %c0_58 = arith.constant 0 : index
    %c0_59 = arith.constant 0 : index
    %66 = vector.load %arg4[%c0_56, %c7_57, %c0_58, %c0_59] : memref<1x8x2x128xf32, #tpu.memory_space<vmem>>, vector<1x1x2x128xf32>
    %67 = vector.shape_cast %66 : vector<1x1x2x128xf32> to vector<2x128xf32>
    %68 = vector.broadcast %65 : f32 to vector<2x128xf32>
    %69 = arith.mulf %67, %68 : vector<2x128xf32>
    %70 = arith.addf %64, %69 : vector<2x128xf32>
    %c0_60 = arith.constant 0 : index
    %c12 = arith.constant 12 : index
    %71 = memref.load %arg2[%c0_60, %c12] : memref<5x13xf32, #tpu.memory_space<smem>>
    %72 = vector.broadcast %71 : f32 to vector<2x128xf32>
    %73 = arith.addf %70, %72 : vector<2x128xf32>
    %c1_61 = arith.constant 1 : index
    %c0_62 = arith.constant 0 : index
    %74 = memref.load %arg2[%c1_61, %c0_62] : memref<5x13xf32, #tpu.memory_space<smem>>
    %c0_63 = arith.constant 0 : index
    %c0_64 = arith.constant 0 : index
    %c0_65 = arith.constant 0 : index
    %c0_66 = arith.constant 0 : index
    %75 = vector.load %arg3[%c0_63, %c0_64, %c0_65, %c0_66] : memref<1x4x2x128xf32, #tpu.memory_space<vmem>>, vector<1x1x2x128xf32>
    %76 = vector.shape_cast %75 : vector<1x1x2x128xf32> to vector<2x128xf32>
    %77 = vector.broadcast %74 : f32 to vector<2x128xf32>
    %78 = arith.mulf %76, %77 : vector<2x128xf32>
    %c1_67 = arith.constant 1 : index
    %c1_68 = arith.constant 1 : index
    %79 = memref.load %arg2[%c1_67, %c1_68] : memref<5x13xf32, #tpu.memory_space<smem>>
    %c0_69 = arith.constant 0 : index
    %c1_70 = arith.constant 1 : index
    %c0_71 = arith.constant 0 : index
    %c0_72 = arith.constant 0 : index
    %80 = vector.load %arg3[%c0_69, %c1_70, %c0_71, %c0_72] : memref<1x4x2x128xf32, #tpu.memory_space<vmem>>, vector<1x1x2x128xf32>
    %81 = vector.shape_cast %80 : vector<1x1x2x128xf32> to vector<2x128xf32>
    %82 = vector.broadcast %79 : f32 to vector<2x128xf32>
    %83 = arith.mulf %81, %82 : vector<2x128xf32>
    %84 = arith.addf %78, %83 : vector<2x128xf32>
    %c1_73 = arith.constant 1 : index
    %c2_74 = arith.constant 2 : index
    %85 = memref.load %arg2[%c1_73, %c2_74] : memref<5x13xf32, #tpu.memory_space<smem>>
    %c0_75 = arith.constant 0 : index
    %c2_76 = arith.constant 2 : index
    %c0_77 = arith.constant 0 : index
    %c0_78 = arith.constant 0 : index
    %86 = vector.load %arg3[%c0_75, %c2_76, %c0_77, %c0_78] : memref<1x4x2x128xf32, #tpu.memory_space<vmem>>, vector<1x1x2x128xf32>
    %87 = vector.shape_cast %86 : vector<1x1x2x128xf32> to vector<2x128xf32>
    %88 = vector.broadcast %85 : f32 to vector<2x128xf32>
    %89 = arith.mulf %87, %88 : vector<2x128xf32>
    %90 = arith.addf %84, %89 : vector<2x128xf32>
    %c1_79 = arith.constant 1 : index
    %c3_80 = arith.constant 3 : index
    %91 = memref.load %arg2[%c1_79, %c3_80] : memref<5x13xf32, #tpu.memory_space<smem>>
    %c0_81 = arith.constant 0 : index
    %c3_82 = arith.constant 3 : index
    %c0_83 = arith.constant 0 : index
    %c0_84 = arith.constant 0 : index
    %92 = vector.load %arg3[%c0_81, %c3_82, %c0_83, %c0_84] : memref<1x4x2x128xf32, #tpu.memory_space<vmem>>, vector<1x1x2x128xf32>
    %93 = vector.shape_cast %92 : vector<1x1x2x128xf32> to vector<2x128xf32>
    %94 = vector.broadcast %91 : f32 to vector<2x128xf32>
    %95 = arith.mulf %93, %94 : vector<2x128xf32>
    %96 = arith.addf %90, %95 : vector<2x128xf32>
    %c1_85 = arith.constant 1 : index
    %c4_86 = arith.constant 4 : index
    %97 = memref.load %arg2[%c1_85, %c4_86] : memref<5x13xf32, #tpu.memory_space<smem>>
    %c0_87 = arith.constant 0 : index
    %c0_88 = arith.constant 0 : index
    %c0_89 = arith.constant 0 : index
    %c0_90 = arith.constant 0 : index
    %98 = vector.load %arg4[%c0_87, %c0_88, %c0_89, %c0_90] : memref<1x8x2x128xf32, #tpu.memory_space<vmem>>, vector<1x1x2x128xf32>
    %99 = vector.shape_cast %98 : vector<1x1x2x128xf32> to vector<2x128xf32>
    %100 = vector.broadcast %97 : f32 to vector<2x128xf32>
    %101 = arith.mulf %99, %100 : vector<2x128xf32>
    %102 = arith.addf %96, %101 : vector<2x128xf32>
    %c1_91 = arith.constant 1 : index
    %c5_92 = arith.constant 5 : index
    %103 = memref.load %arg2[%c1_91, %c5_92] : memref<5x13xf32, #tpu.memory_space<smem>>
    %c0_93 = arith.constant 0 : index
    %c1_94 = arith.constant 1 : index
    %c0_95 = arith.constant 0 : index
    %c0_96 = arith.constant 0 : index
    %104 = vector.load %arg4[%c0_93, %c1_94, %c0_95, %c0_96] : memref<1x8x2x128xf32, #tpu.memory_space<vmem>>, vector<1x1x2x128xf32>
    %105 = vector.shape_cast %104 : vector<1x1x2x128xf32> to vector<2x128xf32>
    %106 = vector.broadcast %103 : f32 to vector<2x128xf32>
    %107 = arith.mulf %105, %106 : vector<2x128xf32>
    %108 = arith.addf %102, %107 : vector<2x128xf32>
    %c1_97 = arith.constant 1 : index
    %c6_98 = arith.constant 6 : index
    %109 = memref.load %arg2[%c1_97, %c6_98] : memref<5x13xf32, #tpu.memory_space<smem>>
    %c0_99 = arith.constant 0 : index
    %c2_100 = arith.constant 2 : index
    %c0_101 = arith.constant 0 : index
    %c0_102 = arith.constant 0 : index
    %110 = vector.load %arg4[%c0_99, %c2_100, %c0_101, %c0_102] : memref<1x8x2x128xf32, #tpu.memory_space<vmem>>, vector<1x1x2x128xf32>
    %111 = vector.shape_cast %110 : vector<1x1x2x128xf32> to vector<2x128xf32>
    %112 = vector.broadcast %109 : f32 to vector<2x128xf32>
    %113 = arith.mulf %111, %112 : vector<2x128xf32>
    %114 = arith.addf %108, %113 : vector<2x128xf32>
    %c1_103 = arith.constant 1 : index
    %c7_104 = arith.constant 7 : index
    %115 = memref.load %arg2[%c1_103, %c7_104] : memref<5x13xf32, #tpu.memory_space<smem>>
    %c0_105 = arith.constant 0 : index
    %c3_106 = arith.constant 3 : index
    %c0_107 = arith.constant 0 : index
    %c0_108 = arith.constant 0 : index
    %116 = vector.load %arg4[%c0_105, %c3_106, %c0_107, %c0_108] : memref<1x8x2x128xf32, #tpu.memory_space<vmem>>, vector<1x1x2x128xf32>
    %117 = vector.shape_cast %116 : vector<1x1x2x128xf32> to vector<2x128xf32>
    %118 = vector.broadcast %115 : f32 to vector<2x128xf32>
    %119 = arith.mulf %117, %118 : vector<2x128xf32>
    %120 = arith.addf %114, %119 : vector<2x128xf32>
    %c1_109 = arith.constant 1 : index
    %c8_110 = arith.constant 8 : index
    %121 = memref.load %arg2[%c1_109, %c8_110] : memref<5x13xf32, #tpu.memory_space<smem>>
    %c0_111 = arith.constant 0 : index
    %c4_112 = arith.constant 4 : index
    %c0_113 = arith.constant 0 : index
    %c0_114 = arith.constant 0 : index
    %122 = vector.load %arg4[%c0_111, %c4_112, %c0_113, %c0_114] : memref<1x8x2x128xf32, #tpu.memory_space<vmem>>, vector<1x1x2x128xf32>
    %123 = vector.shape_cast %122 : vector<1x1x2x128xf32> to vector<2x128xf32>
    %124 = vector.broadcast %121 : f32 to vector<2x128xf32>
    %125 = arith.mulf %123, %124 : vector<2x128xf32>
    %126 = arith.addf %120, %125 : vector<2x128xf32>
    %c1_115 = arith.constant 1 : index
    %c9_116 = arith.constant 9 : index
    %127 = memref.load %arg2[%c1_115, %c9_116] : memref<5x13xf32, #tpu.memory_space<smem>>
    %c0_117 = arith.constant 0 : index
    %c5_118 = arith.constant 5 : index
    %c0_119 = arith.constant 0 : index
    %c0_120 = arith.constant 0 : index
    %128 = vector.load %arg4[%c0_117, %c5_118, %c0_119, %c0_120] : memref<1x8x2x128xf32, #tpu.memory_space<vmem>>, vector<1x1x2x128xf32>
    %129 = vector.shape_cast %128 : vector<1x1x2x128xf32> to vector<2x128xf32>
    %130 = vector.broadcast %127 : f32 to vector<2x128xf32>
    %131 = arith.mulf %129, %130 : vector<2x128xf32>
    %132 = arith.addf %126, %131 : vector<2x128xf32>
    %c1_121 = arith.constant 1 : index
    %c10_122 = arith.constant 10 : index
    %133 = memref.load %arg2[%c1_121, %c10_122] : memref<5x13xf32, #tpu.memory_space<smem>>
    %c0_123 = arith.constant 0 : index
    %c6_124 = arith.constant 6 : index
    %c0_125 = arith.constant 0 : index
    %c0_126 = arith.constant 0 : index
    %134 = vector.load %arg4[%c0_123, %c6_124, %c0_125, %c0_126] : memref<1x8x2x128xf32, #tpu.memory_space<vmem>>, vector<1x1x2x128xf32>
    %135 = vector.shape_cast %134 : vector<1x1x2x128xf32> to vector<2x128xf32>
    %136 = vector.broadcast %133 : f32 to vector<2x128xf32>
    %137 = arith.mulf %135, %136 : vector<2x128xf32>
    %138 = arith.addf %132, %137 : vector<2x128xf32>
    %c1_127 = arith.constant 1 : index
    %c11_128 = arith.constant 11 : index
    %139 = memref.load %arg2[%c1_127, %c11_128] : memref<5x13xf32, #tpu.memory_space<smem>>
    %c0_129 = arith.constant 0 : index
    %c7_130 = arith.constant 7 : index
    %c0_131 = arith.constant 0 : index
    %c0_132 = arith.constant 0 : index
    %140 = vector.load %arg4[%c0_129, %c7_130, %c0_131, %c0_132] : memref<1x8x2x128xf32, #tpu.memory_space<vmem>>, vector<1x1x2x128xf32>
    %141 = vector.shape_cast %140 : vector<1x1x2x128xf32> to vector<2x128xf32>
    %142 = vector.broadcast %139 : f32 to vector<2x128xf32>
    %143 = arith.mulf %141, %142 : vector<2x128xf32>
    %144 = arith.addf %138, %143 : vector<2x128xf32>
    %c1_133 = arith.constant 1 : index
    %c12_134 = arith.constant 12 : index
    %145 = memref.load %arg2[%c1_133, %c12_134] : memref<5x13xf32, #tpu.memory_space<smem>>
    %146 = vector.broadcast %145 : f32 to vector<2x128xf32>
    %147 = arith.addf %144, %146 : vector<2x128xf32>
    %c2_135 = arith.constant 2 : index
    %c0_136 = arith.constant 0 : index
    %148 = memref.load %arg2[%c2_135, %c0_136] : memref<5x13xf32, #tpu.memory_space<smem>>
    %c0_137 = arith.constant 0 : index
    %c0_138 = arith.constant 0 : index
    %c0_139 = arith.constant 0 : index
    %c0_140 = arith.constant 0 : index
    %149 = vector.load %arg3[%c0_137, %c0_138, %c0_139, %c0_140] : memref<1x4x2x128xf32, #tpu.memory_space<vmem>>, vector<1x1x2x128xf32>
    %150 = vector.shape_cast %149 : vector<1x1x2x128xf32> to vector<2x128xf32>
    %151 = vector.broadcast %148 : f32 to vector<2x128xf32>
    %152 = arith.mulf %150, %151 : vector<2x128xf32>
    %c2_141 = arith.constant 2 : index
    %c1_142 = arith.constant 1 : index
    %153 = memref.load %arg2[%c2_141, %c1_142] : memref<5x13xf32, #tpu.memory_space<smem>>
    %c0_143 = arith.constant 0 : index
    %c1_144 = arith.constant 1 : index
    %c0_145 = arith.constant 0 : index
    %c0_146 = arith.constant 0 : index
    %154 = vector.load %arg3[%c0_143, %c1_144, %c0_145, %c0_146] : memref<1x4x2x128xf32, #tpu.memory_space<vmem>>, vector<1x1x2x128xf32>
    %155 = vector.shape_cast %154 : vector<1x1x2x128xf32> to vector<2x128xf32>
    %156 = vector.broadcast %153 : f32 to vector<2x128xf32>
    %157 = arith.mulf %155, %156 : vector<2x128xf32>
    %158 = arith.addf %152, %157 : vector<2x128xf32>
    %c2_147 = arith.constant 2 : index
    %c2_148 = arith.constant 2 : index
    %159 = memref.load %arg2[%c2_147, %c2_148] : memref<5x13xf32, #tpu.memory_space<smem>>
    %c0_149 = arith.constant 0 : index
    %c2_150 = arith.constant 2 : index
    %c0_151 = arith.constant 0 : index
    %c0_152 = arith.constant 0 : index
    %160 = vector.load %arg3[%c0_149, %c2_150, %c0_151, %c0_152] : memref<1x4x2x128xf32, #tpu.memory_space<vmem>>, vector<1x1x2x128xf32>
    %161 = vector.shape_cast %160 : vector<1x1x2x128xf32> to vector<2x128xf32>
    %162 = vector.broadcast %159 : f32 to vector<2x128xf32>
    %163 = arith.mulf %161, %162 : vector<2x128xf32>
    %164 = arith.addf %158, %163 : vector<2x128xf32>
    %c2_153 = arith.constant 2 : index
    %c3_154 = arith.constant 3 : index
    %165 = memref.load %arg2[%c2_153, %c3_154] : memref<5x13xf32, #tpu.memory_space<smem>>
    %c0_155 = arith.constant 0 : index
    %c3_156 = arith.constant 3 : index
    %c0_157 = arith.constant 0 : index
    %c0_158 = arith.constant 0 : index
    %166 = vector.load %arg3[%c0_155, %c3_156, %c0_157, %c0_158] : memref<1x4x2x128xf32, #tpu.memory_space<vmem>>, vector<1x1x2x128xf32>
    %167 = vector.shape_cast %166 : vector<1x1x2x128xf32> to vector<2x128xf32>
    %168 = vector.broadcast %165 : f32 to vector<2x128xf32>
    %169 = arith.mulf %167, %168 : vector<2x128xf32>
    %170 = arith.addf %164, %169 : vector<2x128xf32>
    %c2_159 = arith.constant 2 : index
    %c4_160 = arith.constant 4 : index
    %171 = memref.load %arg2[%c2_159, %c4_160] : memref<5x13xf32, #tpu.memory_space<smem>>
    %c0_161 = arith.constant 0 : index
    %c0_162 = arith.constant 0 : index
    %c0_163 = arith.constant 0 : index
    %c0_164 = arith.constant 0 : index
    %172 = vector.load %arg4[%c0_161, %c0_162, %c0_163, %c0_164] : memref<1x8x2x128xf32, #tpu.memory_space<vmem>>, vector<1x1x2x128xf32>
    %173 = vector.shape_cast %172 : vector<1x1x2x128xf32> to vector<2x128xf32>
    %174 = vector.broadcast %171 : f32 to vector<2x128xf32>
    %175 = arith.mulf %173, %174 : vector<2x128xf32>
    %176 = arith.addf %170, %175 : vector<2x128xf32>
    %c2_165 = arith.constant 2 : index
    %c5_166 = arith.constant 5 : index
    %177 = memref.load %arg2[%c2_165, %c5_166] : memref<5x13xf32, #tpu.memory_space<smem>>
    %c0_167 = arith.constant 0 : index
    %c1_168 = arith.constant 1 : index
    %c0_169 = arith.constant 0 : index
    %c0_170 = arith.constant 0 : index
    %178 = vector.load %arg4[%c0_167, %c1_168, %c0_169, %c0_170] : memref<1x8x2x128xf32, #tpu.memory_space<vmem>>, vector<1x1x2x128xf32>
    %179 = vector.shape_cast %178 : vector<1x1x2x128xf32> to vector<2x128xf32>
    %180 = vector.broadcast %177 : f32 to vector<2x128xf32>
    %181 = arith.mulf %179, %180 : vector<2x128xf32>
    %182 = arith.addf %176, %181 : vector<2x128xf32>
    %c2_171 = arith.constant 2 : index
    %c6_172 = arith.constant 6 : index
    %183 = memref.load %arg2[%c2_171, %c6_172] : memref<5x13xf32, #tpu.memory_space<smem>>
    %c0_173 = arith.constant 0 : index
    %c2_174 = arith.constant 2 : index
    %c0_175 = arith.constant 0 : index
    %c0_176 = arith.constant 0 : index
    %184 = vector.load %arg4[%c0_173, %c2_174, %c0_175, %c0_176] : memref<1x8x2x128xf32, #tpu.memory_space<vmem>>, vector<1x1x2x128xf32>
    %185 = vector.shape_cast %184 : vector<1x1x2x128xf32> to vector<2x128xf32>
    %186 = vector.broadcast %183 : f32 to vector<2x128xf32>
    %187 = arith.mulf %185, %186 : vector<2x128xf32>
    %188 = arith.addf %182, %187 : vector<2x128xf32>
    %c2_177 = arith.constant 2 : index
    %c7_178 = arith.constant 7 : index
    %189 = memref.load %arg2[%c2_177, %c7_178] : memref<5x13xf32, #tpu.memory_space<smem>>
    %c0_179 = arith.constant 0 : index
    %c3_180 = arith.constant 3 : index
    %c0_181 = arith.constant 0 : index
    %c0_182 = arith.constant 0 : index
    %190 = vector.load %arg4[%c0_179, %c3_180, %c0_181, %c0_182] : memref<1x8x2x128xf32, #tpu.memory_space<vmem>>, vector<1x1x2x128xf32>
    %191 = vector.shape_cast %190 : vector<1x1x2x128xf32> to vector<2x128xf32>
    %192 = vector.broadcast %189 : f32 to vector<2x128xf32>
    %193 = arith.mulf %191, %192 : vector<2x128xf32>
    %194 = arith.addf %188, %193 : vector<2x128xf32>
    %c2_183 = arith.constant 2 : index
    %c8_184 = arith.constant 8 : index
    %195 = memref.load %arg2[%c2_183, %c8_184] : memref<5x13xf32, #tpu.memory_space<smem>>
    %c0_185 = arith.constant 0 : index
    %c4_186 = arith.constant 4 : index
    %c0_187 = arith.constant 0 : index
    %c0_188 = arith.constant 0 : index
    %196 = vector.load %arg4[%c0_185, %c4_186, %c0_187, %c0_188] : memref<1x8x2x128xf32, #tpu.memory_space<vmem>>, vector<1x1x2x128xf32>
    %197 = vector.shape_cast %196 : vector<1x1x2x128xf32> to vector<2x128xf32>
    %198 = vector.broadcast %195 : f32 to vector<2x128xf32>
    %199 = arith.mulf %197, %198 : vector<2x128xf32>
    %200 = arith.addf %194, %199 : vector<2x128xf32>
    %c2_189 = arith.constant 2 : index
    %c9_190 = arith.constant 9 : index
    %201 = memref.load %arg2[%c2_189, %c9_190] : memref<5x13xf32, #tpu.memory_space<smem>>
    %c0_191 = arith.constant 0 : index
    %c5_192 = arith.constant 5 : index
    %c0_193 = arith.constant 0 : index
    %c0_194 = arith.constant 0 : index
    %202 = vector.load %arg4[%c0_191, %c5_192, %c0_193, %c0_194] : memref<1x8x2x128xf32, #tpu.memory_space<vmem>>, vector<1x1x2x128xf32>
    %203 = vector.shape_cast %202 : vector<1x1x2x128xf32> to vector<2x128xf32>
    %204 = vector.broadcast %201 : f32 to vector<2x128xf32>
    %205 = arith.mulf %203, %204 : vector<2x128xf32>
    %206 = arith.addf %200, %205 : vector<2x128xf32>
    %c2_195 = arith.constant 2 : index
    %c10_196 = arith.constant 10 : index
    %207 = memref.load %arg2[%c2_195, %c10_196] : memref<5x13xf32, #tpu.memory_space<smem>>
    %c0_197 = arith.constant 0 : index
    %c6_198 = arith.constant 6 : index
    %c0_199 = arith.constant 0 : index
    %c0_200 = arith.constant 0 : index
    %208 = vector.load %arg4[%c0_197, %c6_198, %c0_199, %c0_200] : memref<1x8x2x128xf32, #tpu.memory_space<vmem>>, vector<1x1x2x128xf32>
    %209 = vector.shape_cast %208 : vector<1x1x2x128xf32> to vector<2x128xf32>
    %210 = vector.broadcast %207 : f32 to vector<2x128xf32>
    %211 = arith.mulf %209, %210 : vector<2x128xf32>
    %212 = arith.addf %206, %211 : vector<2x128xf32>
    %c2_201 = arith.constant 2 : index
    %c11_202 = arith.constant 11 : index
    %213 = memref.load %arg2[%c2_201, %c11_202] : memref<5x13xf32, #tpu.memory_space<smem>>
    %c0_203 = arith.constant 0 : index
    %c7_204 = arith.constant 7 : index
    %c0_205 = arith.constant 0 : index
    %c0_206 = arith.constant 0 : index
    %214 = vector.load %arg4[%c0_203, %c7_204, %c0_205, %c0_206] : memref<1x8x2x128xf32, #tpu.memory_space<vmem>>, vector<1x1x2x128xf32>
    %215 = vector.shape_cast %214 : vector<1x1x2x128xf32> to vector<2x128xf32>
    %216 = vector.broadcast %213 : f32 to vector<2x128xf32>
    %217 = arith.mulf %215, %216 : vector<2x128xf32>
    %218 = arith.addf %212, %217 : vector<2x128xf32>
    %c2_207 = arith.constant 2 : index
    %c12_208 = arith.constant 12 : index
    %219 = memref.load %arg2[%c2_207, %c12_208] : memref<5x13xf32, #tpu.memory_space<smem>>
    %220 = vector.broadcast %219 : f32 to vector<2x128xf32>
    %221 = arith.addf %218, %220 : vector<2x128xf32>
    %c3_209 = arith.constant 3 : index
    %c0_210 = arith.constant 0 : index
    %222 = memref.load %arg2[%c3_209, %c0_210] : memref<5x13xf32, #tpu.memory_space<smem>>
    %c0_211 = arith.constant 0 : index
    %c0_212 = arith.constant 0 : index
    %c0_213 = arith.constant 0 : index
    %c0_214 = arith.constant 0 : index
    %223 = vector.load %arg3[%c0_211, %c0_212, %c0_213, %c0_214] : memref<1x4x2x128xf32, #tpu.memory_space<vmem>>, vector<1x1x2x128xf32>
    %224 = vector.shape_cast %223 : vector<1x1x2x128xf32> to vector<2x128xf32>
    %225 = vector.broadcast %222 : f32 to vector<2x128xf32>
    %226 = arith.mulf %224, %225 : vector<2x128xf32>
    %c3_215 = arith.constant 3 : index
    %c1_216 = arith.constant 1 : index
    %227 = memref.load %arg2[%c3_215, %c1_216] : memref<5x13xf32, #tpu.memory_space<smem>>
    %c0_217 = arith.constant 0 : index
    %c1_218 = arith.constant 1 : index
    %c0_219 = arith.constant 0 : index
    %c0_220 = arith.constant 0 : index
    %228 = vector.load %arg3[%c0_217, %c1_218, %c0_219, %c0_220] : memref<1x4x2x128xf32, #tpu.memory_space<vmem>>, vector<1x1x2x128xf32>
    %229 = vector.shape_cast %228 : vector<1x1x2x128xf32> to vector<2x128xf32>
    %230 = vector.broadcast %227 : f32 to vector<2x128xf32>
    %231 = arith.mulf %229, %230 : vector<2x128xf32>
    %232 = arith.addf %226, %231 : vector<2x128xf32>
    %c3_221 = arith.constant 3 : index
    %c2_222 = arith.constant 2 : index
    %233 = memref.load %arg2[%c3_221, %c2_222] : memref<5x13xf32, #tpu.memory_space<smem>>
    %c0_223 = arith.constant 0 : index
    %c2_224 = arith.constant 2 : index
    %c0_225 = arith.constant 0 : index
    %c0_226 = arith.constant 0 : index
    %234 = vector.load %arg3[%c0_223, %c2_224, %c0_225, %c0_226] : memref<1x4x2x128xf32, #tpu.memory_space<vmem>>, vector<1x1x2x128xf32>
    %235 = vector.shape_cast %234 : vector<1x1x2x128xf32> to vector<2x128xf32>
    %236 = vector.broadcast %233 : f32 to vector<2x128xf32>
    %237 = arith.mulf %235, %236 : vector<2x128xf32>
    %238 = arith.addf %232, %237 : vector<2x128xf32>
    %c3_227 = arith.constant 3 : index
    %c3_228 = arith.constant 3 : index
    %239 = memref.load %arg2[%c3_227, %c3_228] : memref<5x13xf32, #tpu.memory_space<smem>>
    %c0_229 = arith.constant 0 : index
    %c3_230 = arith.constant 3 : index
    %c0_231 = arith.constant 0 : index
    %c0_232 = arith.constant 0 : index
    %240 = vector.load %arg3[%c0_229, %c3_230, %c0_231, %c0_232] : memref<1x4x2x128xf32, #tpu.memory_space<vmem>>, vector<1x1x2x128xf32>
    %241 = vector.shape_cast %240 : vector<1x1x2x128xf32> to vector<2x128xf32>
    %242 = vector.broadcast %239 : f32 to vector<2x128xf32>
    %243 = arith.mulf %241, %242 : vector<2x128xf32>
    %244 = arith.addf %238, %243 : vector<2x128xf32>
    %c3_233 = arith.constant 3 : index
    %c4_234 = arith.constant 4 : index
    %245 = memref.load %arg2[%c3_233, %c4_234] : memref<5x13xf32, #tpu.memory_space<smem>>
    %c0_235 = arith.constant 0 : index
    %c0_236 = arith.constant 0 : index
    %c0_237 = arith.constant 0 : index
    %c0_238 = arith.constant 0 : index
    %246 = vector.load %arg4[%c0_235, %c0_236, %c0_237, %c0_238] : memref<1x8x2x128xf32, #tpu.memory_space<vmem>>, vector<1x1x2x128xf32>
    %247 = vector.shape_cast %246 : vector<1x1x2x128xf32> to vector<2x128xf32>
    %248 = vector.broadcast %245 : f32 to vector<2x128xf32>
    %249 = arith.mulf %247, %248 : vector<2x128xf32>
    %250 = arith.addf %244, %249 : vector<2x128xf32>
    %c3_239 = arith.constant 3 : index
    %c5_240 = arith.constant 5 : index
    %251 = memref.load %arg2[%c3_239, %c5_240] : memref<5x13xf32, #tpu.memory_space<smem>>
    %c0_241 = arith.constant 0 : index
    %c1_242 = arith.constant 1 : index
    %c0_243 = arith.constant 0 : index
    %c0_244 = arith.constant 0 : index
    %252 = vector.load %arg4[%c0_241, %c1_242, %c0_243, %c0_244] : memref<1x8x2x128xf32, #tpu.memory_space<vmem>>, vector<1x1x2x128xf32>
    %253 = vector.shape_cast %252 : vector<1x1x2x128xf32> to vector<2x128xf32>
    %254 = vector.broadcast %251 : f32 to vector<2x128xf32>
    %255 = arith.mulf %253, %254 : vector<2x128xf32>
    %256 = arith.addf %250, %255 : vector<2x128xf32>
    %c3_245 = arith.constant 3 : index
    %c6_246 = arith.constant 6 : index
    %257 = memref.load %arg2[%c3_245, %c6_246] : memref<5x13xf32, #tpu.memory_space<smem>>
    %c0_247 = arith.constant 0 : index
    %c2_248 = arith.constant 2 : index
    %c0_249 = arith.constant 0 : index
    %c0_250 = arith.constant 0 : index
    %258 = vector.load %arg4[%c0_247, %c2_248, %c0_249, %c0_250] : memref<1x8x2x128xf32, #tpu.memory_space<vmem>>, vector<1x1x2x128xf32>
    %259 = vector.shape_cast %258 : vector<1x1x2x128xf32> to vector<2x128xf32>
    %260 = vector.broadcast %257 : f32 to vector<2x128xf32>
    %261 = arith.mulf %259, %260 : vector<2x128xf32>
    %262 = arith.addf %256, %261 : vector<2x128xf32>
    %c3_251 = arith.constant 3 : index
    %c7_252 = arith.constant 7 : index
    %263 = memref.load %arg2[%c3_251, %c7_252] : memref<5x13xf32, #tpu.memory_space<smem>>
    %c0_253 = arith.constant 0 : index
    %c3_254 = arith.constant 3 : index
    %c0_255 = arith.constant 0 : index
    %c0_256 = arith.constant 0 : index
    %264 = vector.load %arg4[%c0_253, %c3_254, %c0_255, %c0_256] : memref<1x8x2x128xf32, #tpu.memory_space<vmem>>, vector<1x1x2x128xf32>
    %265 = vector.shape_cast %264 : vector<1x1x2x128xf32> to vector<2x128xf32>
    %266 = vector.broadcast %263 : f32 to vector<2x128xf32>
    %267 = arith.mulf %265, %266 : vector<2x128xf32>
    %268 = arith.addf %262, %267 : vector<2x128xf32>
    %c3_257 = arith.constant 3 : index
    %c8_258 = arith.constant 8 : index
    %269 = memref.load %arg2[%c3_257, %c8_258] : memref<5x13xf32, #tpu.memory_space<smem>>
    %c0_259 = arith.constant 0 : index
    %c4_260 = arith.constant 4 : index
    %c0_261 = arith.constant 0 : index
    %c0_262 = arith.constant 0 : index
    %270 = vector.load %arg4[%c0_259, %c4_260, %c0_261, %c0_262] : memref<1x8x2x128xf32, #tpu.memory_space<vmem>>, vector<1x1x2x128xf32>
    %271 = vector.shape_cast %270 : vector<1x1x2x128xf32> to vector<2x128xf32>
    %272 = vector.broadcast %269 : f32 to vector<2x128xf32>
    %273 = arith.mulf %271, %272 : vector<2x128xf32>
    %274 = arith.addf %268, %273 : vector<2x128xf32>
    %c3_263 = arith.constant 3 : index
    %c9_264 = arith.constant 9 : index
    %275 = memref.load %arg2[%c3_263, %c9_264] : memref<5x13xf32, #tpu.memory_space<smem>>
    %c0_265 = arith.constant 0 : index
    %c5_266 = arith.constant 5 : index
    %c0_267 = arith.constant 0 : index
    %c0_268 = arith.constant 0 : index
    %276 = vector.load %arg4[%c0_265, %c5_266, %c0_267, %c0_268] : memref<1x8x2x128xf32, #tpu.memory_space<vmem>>, vector<1x1x2x128xf32>
    %277 = vector.shape_cast %276 : vector<1x1x2x128xf32> to vector<2x128xf32>
    %278 = vector.broadcast %275 : f32 to vector<2x128xf32>
    %279 = arith.mulf %277, %278 : vector<2x128xf32>
    %280 = arith.addf %274, %279 : vector<2x128xf32>
    %c3_269 = arith.constant 3 : index
    %c10_270 = arith.constant 10 : index
    %281 = memref.load %arg2[%c3_269, %c10_270] : memref<5x13xf32, #tpu.memory_space<smem>>
    %c0_271 = arith.constant 0 : index
    %c6_272 = arith.constant 6 : index
    %c0_273 = arith.constant 0 : index
    %c0_274 = arith.constant 0 : index
    %282 = vector.load %arg4[%c0_271, %c6_272, %c0_273, %c0_274] : memref<1x8x2x128xf32, #tpu.memory_space<vmem>>, vector<1x1x2x128xf32>
    %283 = vector.shape_cast %282 : vector<1x1x2x128xf32> to vector<2x128xf32>
    %284 = vector.broadcast %281 : f32 to vector<2x128xf32>
    %285 = arith.mulf %283, %284 : vector<2x128xf32>
    %286 = arith.addf %280, %285 : vector<2x128xf32>
    %c3_275 = arith.constant 3 : index
    %c11_276 = arith.constant 11 : index
    %287 = memref.load %arg2[%c3_275, %c11_276] : memref<5x13xf32, #tpu.memory_space<smem>>
    %c0_277 = arith.constant 0 : index
    %c7_278 = arith.constant 7 : index
    %c0_279 = arith.constant 0 : index
    %c0_280 = arith.constant 0 : index
    %288 = vector.load %arg4[%c0_277, %c7_278, %c0_279, %c0_280] : memref<1x8x2x128xf32, #tpu.memory_space<vmem>>, vector<1x1x2x128xf32>
    %289 = vector.shape_cast %288 : vector<1x1x2x128xf32> to vector<2x128xf32>
    %290 = vector.broadcast %287 : f32 to vector<2x128xf32>
    %291 = arith.mulf %289, %290 : vector<2x128xf32>
    %292 = arith.addf %286, %291 : vector<2x128xf32>
    %c3_281 = arith.constant 3 : index
    %c12_282 = arith.constant 12 : index
    %293 = memref.load %arg2[%c3_281, %c12_282] : memref<5x13xf32, #tpu.memory_space<smem>>
    %294 = vector.broadcast %293 : f32 to vector<2x128xf32>
    %295 = arith.addf %292, %294 : vector<2x128xf32>
    %c4_283 = arith.constant 4 : index
    %c0_284 = arith.constant 0 : index
    %296 = memref.load %arg2[%c4_283, %c0_284] : memref<5x13xf32, #tpu.memory_space<smem>>
    %c0_285 = arith.constant 0 : index
    %c0_286 = arith.constant 0 : index
    %c0_287 = arith.constant 0 : index
    %c0_288 = arith.constant 0 : index
    %297 = vector.load %arg3[%c0_285, %c0_286, %c0_287, %c0_288] : memref<1x4x2x128xf32, #tpu.memory_space<vmem>>, vector<1x1x2x128xf32>
    %298 = vector.shape_cast %297 : vector<1x1x2x128xf32> to vector<2x128xf32>
    %299 = vector.broadcast %296 : f32 to vector<2x128xf32>
    %300 = arith.mulf %298, %299 : vector<2x128xf32>
    %c4_289 = arith.constant 4 : index
    %c1_290 = arith.constant 1 : index
    %301 = memref.load %arg2[%c4_289, %c1_290] : memref<5x13xf32, #tpu.memory_space<smem>>
    %c0_291 = arith.constant 0 : index
    %c1_292 = arith.constant 1 : index
    %c0_293 = arith.constant 0 : index
    %c0_294 = arith.constant 0 : index
    %302 = vector.load %arg3[%c0_291, %c1_292, %c0_293, %c0_294] : memref<1x4x2x128xf32, #tpu.memory_space<vmem>>, vector<1x1x2x128xf32>
    %303 = vector.shape_cast %302 : vector<1x1x2x128xf32> to vector<2x128xf32>
    %304 = vector.broadcast %301 : f32 to vector<2x128xf32>
    %305 = arith.mulf %303, %304 : vector<2x128xf32>
    %306 = arith.addf %300, %305 : vector<2x128xf32>
    %c4_295 = arith.constant 4 : index
    %c2_296 = arith.constant 2 : index
    %307 = memref.load %arg2[%c4_295, %c2_296] : memref<5x13xf32, #tpu.memory_space<smem>>
    %c0_297 = arith.constant 0 : index
    %c2_298 = arith.constant 2 : index
    %c0_299 = arith.constant 0 : index
    %c0_300 = arith.constant 0 : index
    %308 = vector.load %arg3[%c0_297, %c2_298, %c0_299, %c0_300] : memref<1x4x2x128xf32, #tpu.memory_space<vmem>>, vector<1x1x2x128xf32>
    %309 = vector.shape_cast %308 : vector<1x1x2x128xf32> to vector<2x128xf32>
    %310 = vector.broadcast %307 : f32 to vector<2x128xf32>
    %311 = arith.mulf %309, %310 : vector<2x128xf32>
    %312 = arith.addf %306, %311 : vector<2x128xf32>
    %c4_301 = arith.constant 4 : index
    %c3_302 = arith.constant 3 : index
    %313 = memref.load %arg2[%c4_301, %c3_302] : memref<5x13xf32, #tpu.memory_space<smem>>
    %c0_303 = arith.constant 0 : index
    %c3_304 = arith.constant 3 : index
    %c0_305 = arith.constant 0 : index
    %c0_306 = arith.constant 0 : index
    %314 = vector.load %arg3[%c0_303, %c3_304, %c0_305, %c0_306] : memref<1x4x2x128xf32, #tpu.memory_space<vmem>>, vector<1x1x2x128xf32>
    %315 = vector.shape_cast %314 : vector<1x1x2x128xf32> to vector<2x128xf32>
    %316 = vector.broadcast %313 : f32 to vector<2x128xf32>
    %317 = arith.mulf %315, %316 : vector<2x128xf32>
    %318 = arith.addf %312, %317 : vector<2x128xf32>
    %c4_307 = arith.constant 4 : index
    %c4_308 = arith.constant 4 : index
    %319 = memref.load %arg2[%c4_307, %c4_308] : memref<5x13xf32, #tpu.memory_space<smem>>
    %c0_309 = arith.constant 0 : index
    %c0_310 = arith.constant 0 : index
    %c0_311 = arith.constant 0 : index
    %c0_312 = arith.constant 0 : index
    %320 = vector.load %arg4[%c0_309, %c0_310, %c0_311, %c0_312] : memref<1x8x2x128xf32, #tpu.memory_space<vmem>>, vector<1x1x2x128xf32>
    %321 = vector.shape_cast %320 : vector<1x1x2x128xf32> to vector<2x128xf32>
    %322 = vector.broadcast %319 : f32 to vector<2x128xf32>
    %323 = arith.mulf %321, %322 : vector<2x128xf32>
    %324 = arith.addf %318, %323 : vector<2x128xf32>
    %c4_313 = arith.constant 4 : index
    %c5_314 = arith.constant 5 : index
    %325 = memref.load %arg2[%c4_313, %c5_314] : memref<5x13xf32, #tpu.memory_space<smem>>
    %c0_315 = arith.constant 0 : index
    %c1_316 = arith.constant 1 : index
    %c0_317 = arith.constant 0 : index
    %c0_318 = arith.constant 0 : index
    %326 = vector.load %arg4[%c0_315, %c1_316, %c0_317, %c0_318] : memref<1x8x2x128xf32, #tpu.memory_space<vmem>>, vector<1x1x2x128xf32>
    %327 = vector.shape_cast %326 : vector<1x1x2x128xf32> to vector<2x128xf32>
    %328 = vector.broadcast %325 : f32 to vector<2x128xf32>
    %329 = arith.mulf %327, %328 : vector<2x128xf32>
    %330 = arith.addf %324, %329 : vector<2x128xf32>
    %c4_319 = arith.constant 4 : index
    %c6_320 = arith.constant 6 : index
    %331 = memref.load %arg2[%c4_319, %c6_320] : memref<5x13xf32, #tpu.memory_space<smem>>
    %c0_321 = arith.constant 0 : index
    %c2_322 = arith.constant 2 : index
    %c0_323 = arith.constant 0 : index
    %c0_324 = arith.constant 0 : index
    %332 = vector.load %arg4[%c0_321, %c2_322, %c0_323, %c0_324] : memref<1x8x2x128xf32, #tpu.memory_space<vmem>>, vector<1x1x2x128xf32>
    %333 = vector.shape_cast %332 : vector<1x1x2x128xf32> to vector<2x128xf32>
    %334 = vector.broadcast %331 : f32 to vector<2x128xf32>
    %335 = arith.mulf %333, %334 : vector<2x128xf32>
    %336 = arith.addf %330, %335 : vector<2x128xf32>
    %c4_325 = arith.constant 4 : index
    %c7_326 = arith.constant 7 : index
    %337 = memref.load %arg2[%c4_325, %c7_326] : memref<5x13xf32, #tpu.memory_space<smem>>
    %c0_327 = arith.constant 0 : index
    %c3_328 = arith.constant 3 : index
    %c0_329 = arith.constant 0 : index
    %c0_330 = arith.constant 0 : index
    %338 = vector.load %arg4[%c0_327, %c3_328, %c0_329, %c0_330] : memref<1x8x2x128xf32, #tpu.memory_space<vmem>>, vector<1x1x2x128xf32>
    %339 = vector.shape_cast %338 : vector<1x1x2x128xf32> to vector<2x128xf32>
    %340 = vector.broadcast %337 : f32 to vector<2x128xf32>
    %341 = arith.mulf %339, %340 : vector<2x128xf32>
    %342 = arith.addf %336, %341 : vector<2x128xf32>
    %c4_331 = arith.constant 4 : index
    %c8_332 = arith.constant 8 : index
    %343 = memref.load %arg2[%c4_331, %c8_332] : memref<5x13xf32, #tpu.memory_space<smem>>
    %c0_333 = arith.constant 0 : index
    %c4_334 = arith.constant 4 : index
    %c0_335 = arith.constant 0 : index
    %c0_336 = arith.constant 0 : index
    %344 = vector.load %arg4[%c0_333, %c4_334, %c0_335, %c0_336] : memref<1x8x2x128xf32, #tpu.memory_space<vmem>>, vector<1x1x2x128xf32>
    %345 = vector.shape_cast %344 : vector<1x1x2x128xf32> to vector<2x128xf32>
    %346 = vector.broadcast %343 : f32 to vector<2x128xf32>
    %347 = arith.mulf %345, %346 : vector<2x128xf32>
    %348 = arith.addf %342, %347 : vector<2x128xf32>
    %c4_337 = arith.constant 4 : index
    %c9_338 = arith.constant 9 : index
    %349 = memref.load %arg2[%c4_337, %c9_338] : memref<5x13xf32, #tpu.memory_space<smem>>
    %c0_339 = arith.constant 0 : index
    %c5_340 = arith.constant 5 : index
    %c0_341 = arith.constant 0 : index
    %c0_342 = arith.constant 0 : index
    %350 = vector.load %arg4[%c0_339, %c5_340, %c0_341, %c0_342] : memref<1x8x2x128xf32, #tpu.memory_space<vmem>>, vector<1x1x2x128xf32>
    %351 = vector.shape_cast %350 : vector<1x1x2x128xf32> to vector<2x128xf32>
    %352 = vector.broadcast %349 : f32 to vector<2x128xf32>
    %353 = arith.mulf %351, %352 : vector<2x128xf32>
    %354 = arith.addf %348, %353 : vector<2x128xf32>
    %c4_343 = arith.constant 4 : index
    %c10_344 = arith.constant 10 : index
    %355 = memref.load %arg2[%c4_343, %c10_344] : memref<5x13xf32, #tpu.memory_space<smem>>
    %c0_345 = arith.constant 0 : index
    %c6_346 = arith.constant 6 : index
    %c0_347 = arith.constant 0 : index
    %c0_348 = arith.constant 0 : index
    %356 = vector.load %arg4[%c0_345, %c6_346, %c0_347, %c0_348] : memref<1x8x2x128xf32, #tpu.memory_space<vmem>>, vector<1x1x2x128xf32>
    %357 = vector.shape_cast %356 : vector<1x1x2x128xf32> to vector<2x128xf32>
    %358 = vector.broadcast %355 : f32 to vector<2x128xf32>
    %359 = arith.mulf %357, %358 : vector<2x128xf32>
    %360 = arith.addf %354, %359 : vector<2x128xf32>
    %c4_349 = arith.constant 4 : index
    %c11_350 = arith.constant 11 : index
    %361 = memref.load %arg2[%c4_349, %c11_350] : memref<5x13xf32, #tpu.memory_space<smem>>
    %c0_351 = arith.constant 0 : index
    %c7_352 = arith.constant 7 : index
    %c0_353 = arith.constant 0 : index
    %c0_354 = arith.constant 0 : index
    %362 = vector.load %arg4[%c0_351, %c7_352, %c0_353, %c0_354] : memref<1x8x2x128xf32, #tpu.memory_space<vmem>>, vector<1x1x2x128xf32>
    %363 = vector.shape_cast %362 : vector<1x1x2x128xf32> to vector<2x128xf32>
    %364 = vector.broadcast %361 : f32 to vector<2x128xf32>
    %365 = arith.mulf %363, %364 : vector<2x128xf32>
    %366 = arith.addf %360, %365 : vector<2x128xf32>
    %c4_355 = arith.constant 4 : index
    %c12_356 = arith.constant 12 : index
    %367 = memref.load %arg2[%c4_355, %c12_356] : memref<5x13xf32, #tpu.memory_space<smem>>
    %368 = vector.broadcast %367 : f32 to vector<2x128xf32>
    %369 = arith.addf %366, %368 : vector<2x128xf32>
    %370 = arith.maximumf %73, %147 : vector<2x128xf32>
    %371 = arith.maximumf %370, %221 : vector<2x128xf32>
    %372 = arith.maximumf %371, %295 : vector<2x128xf32>
    %373 = arith.maximumf %372, %369 : vector<2x128xf32>
    %374 = arith.subf %73, %373 : vector<2x128xf32>
    %375 = math.exp %374 : vector<2x128xf32>
    %376 = arith.subf %147, %373 : vector<2x128xf32>
    %377 = math.exp %376 : vector<2x128xf32>
    %378 = arith.subf %221, %373 : vector<2x128xf32>
    %379 = math.exp %378 : vector<2x128xf32>
    %380 = arith.subf %295, %373 : vector<2x128xf32>
    %381 = math.exp %380 : vector<2x128xf32>
    %382 = arith.subf %369, %373 : vector<2x128xf32>
    %383 = math.exp %382 : vector<2x128xf32>
    %384 = arith.addf %375, %377 : vector<2x128xf32>
    %385 = arith.addf %384, %379 : vector<2x128xf32>
    %386 = arith.addf %385, %381 : vector<2x128xf32>
    %387 = arith.addf %386, %383 : vector<2x128xf32>
    %388 = tpu.reciprocal %387 : vector<2x128xf32> -> vector<2x128xf32>
    %389 = arith.mulf %375, %388 : vector<2x128xf32>
    %c0_357 = arith.constant 0 : index
    %c0_358 = arith.constant 0 : index
    %c0_359 = arith.constant 0 : index
    %c0_360 = arith.constant 0 : index
    %390 = vector.load %arg5[%c0_357, %c0_358, %c0_359, %c0_360] : memref<1x5x2x128xf32, #tpu.memory_space<vmem>>, vector<1x1x2x128xf32>
    %391 = vector.shape_cast %390 : vector<1x1x2x128xf32> to vector<2x128xf32>
    %392 = vector.shape_cast %389 : vector<2x128xf32> to vector<1x1x2x128xf32>
    tpu.vector_store %arg5[%c0_357, %c0_358, %c0_359, %c0_360], %392 {strides = array<i32>} : memref<1x5x2x128xf32, #tpu.memory_space<vmem>>, vector<1x1x2x128xf32>,
    %393 = arith.mulf %377, %388 : vector<2x128xf32>
    %c0_361 = arith.constant 0 : index
    %c1_362 = arith.constant 1 : index
    %c0_363 = arith.constant 0 : index
    %c0_364 = arith.constant 0 : index
    %394 = vector.load %arg5[%c0_361, %c1_362, %c0_363, %c0_364] : memref<1x5x2x128xf32, #tpu.memory_space<vmem>>, vector<1x1x2x128xf32>
    %395 = vector.shape_cast %394 : vector<1x1x2x128xf32> to vector<2x128xf32>
    %396 = vector.shape_cast %393 : vector<2x128xf32> to vector<1x1x2x128xf32>
    tpu.vector_store %arg5[%c0_361, %c1_362, %c0_363, %c0_364], %396 {strides = array<i32>} : memref<1x5x2x128xf32, #tpu.memory_space<vmem>>, vector<1x1x2x128xf32>,
    %397 = arith.mulf %379, %388 : vector<2x128xf32>
    %c0_365 = arith.constant 0 : index
    %c2_366 = arith.constant 2 : index
    %c0_367 = arith.constant 0 : index
    %c0_368 = arith.constant 0 : index
    %398 = vector.load %arg5[%c0_365, %c2_366, %c0_367, %c0_368] : memref<1x5x2x128xf32, #tpu.memory_space<vmem>>, vector<1x1x2x128xf32>
    %399 = vector.shape_cast %398 : vector<1x1x2x128xf32> to vector<2x128xf32>
    %400 = vector.shape_cast %397 : vector<2x128xf32> to vector<1x1x2x128xf32>
    tpu.vector_store %arg5[%c0_365, %c2_366, %c0_367, %c0_368], %400 {strides = array<i32>} : memref<1x5x2x128xf32, #tpu.memory_space<vmem>>, vector<1x1x2x128xf32>,
    %401 = arith.mulf %381, %388 : vector<2x128xf32>
    %c0_369 = arith.constant 0 : index
    %c3_370 = arith.constant 3 : index
    %c0_371 = arith.constant 0 : index
    %c0_372 = arith.constant 0 : index
    %402 = vector.load %arg5[%c0_369, %c3_370, %c0_371, %c0_372] : memref<1x5x2x128xf32, #tpu.memory_space<vmem>>, vector<1x1x2x128xf32>
    %403 = vector.shape_cast %402 : vector<1x1x2x128xf32> to vector<2x128xf32>
    %404 = vector.shape_cast %401 : vector<2x128xf32> to vector<1x1x2x128xf32>
    tpu.vector_store %arg5[%c0_369, %c3_370, %c0_371, %c0_372], %404 {strides = array<i32>} : memref<1x5x2x128xf32, #tpu.memory_space<vmem>>, vector<1x1x2x128xf32>,
    %405 = arith.mulf %383, %388 : vector<2x128xf32>
    %c0_373 = arith.constant 0 : index
    %c4_374 = arith.constant 4 : index
    %c0_375 = arith.constant 0 : index
    %c0_376 = arith.constant 0 : index
    %406 = vector.load %arg5[%c0_373, %c4_374, %c0_375, %c0_376] : memref<1x5x2x128xf32, #tpu.memory_space<vmem>>, vector<1x1x2x128xf32>
    %407 = vector.shape_cast %406 : vector<1x1x2x128xf32> to vector<2x128xf32>
    %408 = vector.shape_cast %405 : vector<2x128xf32> to vector<1x1x2x128xf32>
    tpu.vector_store %arg5[%c0_373, %c4_374, %c0_375, %c0_376], %408 {strides = array<i32>} : memref<1x5x2x128xf32, #tpu.memory_space<vmem>>, vector<1x1x2x128xf32>,
    return
  }
  func.func @transform_0(%arg0: i32, %arg1: i32) -> (i32, i32) {
    %c0_i32 = arith.constant 0 : i32
    %c0_i32_0 = arith.constant 0 : i32
    %c0_i32_1 = arith.constant 0 : i32
    return %c0_i32, %c0_i32_0 : i32, i32
  }
  func.func @transform_1(%arg0: i32, %arg1: i32) -> (i32, i32, i32, i32) {
    %c0_i32 = arith.constant 0 : i32
    %c0_i32_0 = arith.constant 0 : i32
    %c0_i32_1 = arith.constant 0 : i32
    return %arg0, %c0_i32, %arg1, %c0_i32_0 : i32, i32, i32, i32
  }
  func.func @transform_2(%arg0: i32, %arg1: i32) -> (i32, i32, i32, i32) {
    %c0_i32 = arith.constant 0 : i32
    %c0_i32_0 = arith.constant 0 : i32
    %c0_i32_1 = arith.constant 0 : i32
    return %arg0, %c0_i32, %arg1, %c0_i32_0 : i32, i32, i32, i32
  }
  func.func @transform_3(%arg0: i32, %arg1: i32) -> (i32, i32, i32, i32) {
    %c0_i32 = arith.constant 0 : i32
    %c0_i32_0 = arith.constant 0 : i32
    %c0_i32_1 = arith.constant 0 : i32
    return %arg0, %c0_i32, %arg1, %c0_i32_0 : i32, i32, i32, i32
  }
}

</mosaic_0001>

<llo_original>
// kernel: tpu_custom_call.1
$region0: #{tpu_custom_call.1}
  #allocation0 [shape = 'u32[]', space=smem, size = 0x4, offset = 0x4, fixed_abs, tag = 'smem constant byte address 0x4 - core index']
  #allocation1 [shape = 'u32[144,128]{1,0:T(1,128)}', space=vmem, size = 0x12000, scoped, tag = 'internal scratch']
  %s0 = inlined_call_operand.hbm [shape: f32[5,13], index: 0, kind: input, shape index: {}]
  %s1 = inlined_call_operand.hbm [shape: f32[2,4,2,128], index: 1, kind: input, shape index: {}]
  %s2 = inlined_call_operand.hbm [shape: f32[2,8,2,128], index: 2, kind: input, shape index: {}]
  %s3 = inlined_call_operand.hbm [shape: f32[2,5,2,128], index: 3, kind: output, shape index: {}]
  %s4 = sld [smem:[#allocation0]]
  $region57: #{tpu_custom_call.1} parent=0
    _
  %s6 = ssub.s32 1, %s4
  %s7 = scalar_select 0, %s6, %s4
  $region1: #{tpu_custom_call.1} parent=0
    #allocation2 [shape = 'u8[4096]{0}', space=smem, size = 0x1000, scoped, tag = 'input window, operand 0, single buffered']
    #allocation3 [shape = 's32[2]{0}', space=sflag, size = 0x8, scoped, tag = 'scoped memory for tpu_custom_call.1']
    #allocation4 [shape = 's32[2]{0}', space=sflag, size = 0x8, scoped, tag = 'scoped memory for tpu_custom_call.1']
    #allocation5 [shape = 's32[2]{0}', space=sflag, size = 0x8, scoped, tag = 'scoped memory for tpu_custom_call.1']
    #allocation6 [shape = 'u8[8192]{0}', space=vmem, size = 0x2000, scoped, tag = 'input window, operand 1']
    #allocation7 [shape = 'u8[16384]{0}', space=vmem, size = 0x4000, scoped, tag = 'input window, operand 2']
    #allocation8 [shape = 's32[2]{0}', space=sflag, size = 0x8, scoped, tag = 'scoped memory for tpu_custom_call.1']
    #allocation9 [shape = 'u8[10240]{0}', space=vmem, size = 0x2800, scoped, tag = 'output window, operand 0']
    %8 = vsyncpa [#allocation5], 0
    %9 = vsyncpa [#allocation3], 0
    %s10 = scalar_lea.sflag [#allocation3], 1
    %11 = vsyncpa %s10, 0
    %12 = vsyncpa [#allocation8], 0
    %s13 = scalar_lea.sflag [#allocation8], 1
    %14 = vsyncpa %s13, 0
    %15 = vsyncpa [#allocation4], 0
    %s16 = scalar_lea.sflag [#allocation4], 1
    %17 = vsyncpa %s16, 0
    loop: start=0, step=1, limit=4
    $region2: #{tpu_custom_call.1} parent=1 // loop_pre_header
      _
    $region3: #{tpu_custom_call.1} parent=1 // loop_header
      %s19 = sphi 0, %s23
      %p20 = scmp.ge.s32.totalorder %s19, 4
      %s26 = sphi 0, %s38
      %s27 = sphi 0, %s34
      %s28 = sphi 0, %s26
      %s29 = sphi 0, %s27
      %s30 = sphi 0, %s28
      %s31 = sphi 0, %s29
      %s39 = sphi 0, %s39
      %s41 = sphi 0, %s39
      %s42 = sphi 0, %s41
      %s56 = sphi 0, %s42
      %s64 = sphi 0, %s66
      %s67 = sphi 0, %s64
      %s68 = sphi 0, %s67
      %s84 = sphi 0, %s68
      %s92 = sphi 0, %s94
      %s95 = sphi 0, %s92
      %s96 = sphi 0, %s95
      %s112 = sphi 0, %s96
      %s120 = sphi 0, %s122
      %s123 = sphi 0, %s120
      %s124 = sphi 0, %s123
      %s140 = sphi 0, %s124
    $region4: #{tpu_custom_call.1} parent=1 // loop_header_branch
      %22 = sbr.rel (%p20) target = $region8
    $region5: #{tpu_custom_call.1} parent=1 // loop_body
      %s24 = ssub.s32 %s19, 1
      %s25 = ssub.s32 %s19, 2
      %s32 = sadd.s32 1, %s27
      %p33 = scmp.ge.s32.totalorder %s32, 1
      %s34 = scalar_select %p33, 0, %s32
      %s35 = sadd.s32 1, %s26
      %s36 = scalar_select %p33, %s35, %s26
      %p37 = scmp.ge.s32.totalorder %s36, 2
      %s38 = scalar_select %p37, 0, %s36
      %s40 = sadd.s32 %s39, 1
      %p43 = scmp.eq.s32.totalorder %s19, 1
      %p44 = scmp.ne.s32.totalorder %s39, %s41
      %p45 = scmp.eq.s32.totalorder %s19, 0
      %p46 = por %p44, %p45
      %p47 = scmp.ne.s32.totalorder %s39, %s41
      %p48 = scmp.eq.s32.totalorder %s24, 1
      %p49 = por %p47, %p48
      %p50 = scmp.ne.s32.totalorder %s41, %s42
      %p51 = scmp.eq.s32.totalorder %s24, 0
      %p52 = por %p50, %p51
      %p53 = scmp.ne.s32.totalorder %s41, %s42
      %p54 = scmp.eq.s32.totalorder %s25, 1
      %p55 = por %p53, %p54
      %p57 = scmp.ne.s32.totalorder %s42, %s56
      %p58 = scmp.eq.s32.totalorder %s25, 0
      %p59 = por %p57, %p58
      %s60 = ssub.s32 %s26, %s38
      %s61 = ssub.s32 %s27, %s34
      %s62 = sor.u32 %s60, %s61
      %p63 = scmp.eq.s32.totalorder %s62, 0
      %s65 = sadd.s32 %s64, 1
      %s66 = scalar_select %p63, %s64, %s65
      %p69 = pneg %p63
      %p70 = scmp.eq.s32.totalorder %s19, 1
      %p71 = por %p69, %p70
      %p72 = scmp.ne.s32.totalorder %s64, %s67
      %p73 = scmp.eq.s32.totalorder %s19, 0
      %p74 = por %p72, %p73
      %p75 = scmp.ne.s32.totalorder %s64, %s67
      %p76 = scmp.eq.s32.totalorder %s24, 1
      %p77 = por %p75, %p76
      %p78 = scmp.ne.s32.totalorder %s67, %s68
      %p79 = scmp.eq.s32.totalorder %s24, 0
      %p80 = por %p78, %p79
      %p81 = scmp.ne.s32.totalorder %s67, %s68
      %p82 = scmp.eq.s32.totalorder %s25, 1
      %p83 = por %p81, %p82
      %p85 = scmp.ne.s32.totalorder %s68, %s84
      %p86 = scmp.eq.s32.totalorder %s25, 0
      %p87 = por %p85, %p86
      %s88 = ssub.s32 %s26, %s38
      %s89 = ssub.s32 %s27, %s34
      %s90 = sor.u32 %s88, %s89
      %p91 = scmp.eq.s32.totalorder %s90, 0
      %s93 = sadd.s32 %s92, 1
      %s94 = scalar_select %p91, %s92, %s93
      %p97 = pneg %p91
      %p98 = scmp.eq.s32.totalorder %s19, 1
      %p99 = por %p97, %p98
      %p100 = scmp.ne.s32.totalorder %s92, %s95
      %p101 = scmp.eq.s32.totalorder %s19, 0
      %p102 = por %p100, %p101
      %p103 = scmp.ne.s32.totalorder %s92, %s95
      %p104 = scmp.eq.s32.totalorder %s24, 1
      %p105 = por %p103, %p104
      %p106 = scmp.ne.s32.totalorder %s95, %s96
      %p107 = scmp.eq.s32.totalorder %s24, 0
      %p108 = por %p106, %p107
      %p109 = scmp.ne.s32.totalorder %s95, %s96
      %p110 = scmp.eq.s32.totalorder %s25, 1
      %p111 = por %p109, %p110
      %p113 = scmp.ne.s32.totalorder %s96, %s112
      %p114 = scmp.eq.s32.totalorder %s25, 0
      %p115 = por %p113, %p114
      %s116 = ssub.s32 %s26, %s38
      %s117 = ssub.s32 %s27, %s34
      %s118 = sor.u32 %s116, %s117
      %p119 = scmp.eq.s32.totalorder %s118, 0
      %s121 = sadd.s32 %s120, 1
      %s122 = scalar_select %p119, %s120, %s121
      %p125 = pneg %p119
      %p126 = scmp.eq.s32.totalorder %s19, 1
      %p127 = por %p125, %p126
      %p128 = scmp.ne.s32.totalorder %s120, %s123
      %p129 = scmp.eq.s32.totalorder %s19, 0
      %p130 = por %p128, %p129
      %p131 = scmp.ne.s32.totalorder %s120, %s123
      %p132 = scmp.eq.s32.totalorder %s24, 1
      %p133 = por %p131, %p132
      %p134 = scmp.ne.s32.totalorder %s123, %s124
      %p135 = scmp.eq.s32.totalorder %s24, 0
      %p136 = por %p134, %p135
      %p137 = scmp.ne.s32.totalorder %s123, %s124
      %p138 = scmp.eq.s32.totalorder %s25, 1
      %p139 = por %p137, %p138
      %p141 = scmp.ne.s32.totalorder %s124, %s140
      %p142 = scmp.eq.s32.totalorder %s25, 0
      %p143 = por %p141, %p142
      %p144 = scmp.le.s32.totalorder 1, %s19
      %p145 = scmp.lt.s32.totalorder %s19, 3
      %p146 = pnand %p144, %p145
      %p147 = pneg %p146
      // Predicated region
      $region9: #{tpu_custom_call.1} parent=5 // pred_check
        _
      $region10: #{tpu_custom_call.1} parent=5 // pred_check_branch
        %149 = sbr.rel (%p146) target = $region12
      $region11: #{tpu_custom_call.1} parent=5 // pred_region
        %s150 = ssub.s32 %s19, 1
        // Predicated region
        $region13: #{tpu_custom_call.1} parent=11 // pred_check
          %p151 = pneg %p52
        $region14: #{tpu_custom_call.1} parent=11 // pred_check_branch
          %153 = sbr.rel (%p151) target = $region16
        $region15: #{tpu_custom_call.1} parent=11 // pred_region
          %s155 = ssub.s32 128, 128
          %156 = vsyncadd [#allocation5], %s155
          %159 = dma.hbm_to_smem %s0, 128, [#allocation2], [#allocation5]
        $region16: #{tpu_custom_call.1} parent=11 // pred_fallthru
          _
      $region12: #{tpu_custom_call.1} parent=5 // pred_fallthru
        _
      %p160 = scmp.lt.s32.totalorder %s19, 2
      // Predicated region
      $region17: #{tpu_custom_call.1} parent=5 // pred_check
        %p161 = pneg %p160
      $region18: #{tpu_custom_call.1} parent=5 // pred_check_branch
        %163 = sbr.rel (%p161) target = $region20
      $region19: #{tpu_custom_call.1} parent=5 // pred_region
        // Predicated region
        $region21: #{tpu_custom_call.1} parent=19 // pred_check
          %p164 = pneg %p74
        $region22: #{tpu_custom_call.1} parent=19 // pred_check_branch
          %166 = sbr.rel (%p164) target = $region24
        $region23: #{tpu_custom_call.1} parent=19 // pred_region
          %s167 = sand.u32 %s64, 1
          %s168 = scalar_lea.sflag [#allocation3], %s167
          %s169 = sand.u32 %s64, 1
          %s170 = smul.addr %s169, 8
          %s171 = scalar_lea.vmem [#allocation6], %s170
          %s173 = ssub.s32 128, 128
          %174 = vsyncadd %s168, %s173
          %s175 = smul.addr %s26, 4
          %s176 = sadd.s32 %s27, %s175
          %s177 = smul.addr %s176, 32
          %s178 = scalar_lea.hbm %s1, %s177
          %s179 = sshll.u32 %s171, 4
          %s180 = int_to_ptr.vmem [resolvable:$true] %s179
          %185 = dma.hbm_to_vmem [thread:$0]  %s178, 128, %s180, %s168, 32, 32, 2
        $region24: #{tpu_custom_call.1} parent=19 // pred_fallthru
          _
        // Predicated region
        $region25: #{tpu_custom_call.1} parent=19 // pred_check
          %p186 = pneg %p102
        $region26: #{tpu_custom_call.1} parent=19 // pred_check_branch
          %188 = sbr.rel (%p186) target = $region28
        $region27: #{tpu_custom_call.1} parent=19 // pred_region
          %s189 = sand.u32 %s92, 1
          %s190 = scalar_lea.sflag [#allocation8], %s189
          %s191 = sand.u32 %s92, 1
          %s192 = smul.addr %s191, 16
          %s193 = scalar_lea.vmem [#allocation7], %s192
          %s195 = ssub.s32 256, 256
          %196 = vsyncadd %s190, %s195
          %s197 = smul.addr %s26, 8
          %s198 = sadd.s32 %s27, %s197
          %s199 = smul.addr %s198, 32
          %s200 = scalar_lea.hbm %s2, %s199
          %s201 = sshll.u32 %s193, 4
          %s202 = int_to_ptr.vmem [resolvable:$true] %s201
          %207 = dma.hbm_to_vmem [thread:$0]  %s200, 256, %s202, %s190, 32, 32, 2
        $region28: #{tpu_custom_call.1} parent=19 // pred_fallthru
          _
      $region20: #{tpu_custom_call.1} parent=5 // pred_fallthru
        _
      %p208 = scmp.le.s32.totalorder 1, %s19
      %p209 = scmp.lt.s32.totalorder %s19, 3
      %p210 = pnand %p208, %p209
      %p211 = pneg %p210
      // Predicated region
      $region29: #{tpu_custom_call.1} parent=5 // pred_check
        _
      $region30: #{tpu_custom_call.1} parent=5 // pred_check_branch
        %213 = sbr.rel (%p210) target = $region32
      $region31: #{tpu_custom_call.1} parent=5 // pred_region
        %s214 = ssub.s32 %s19, 1
        // Predicated region
        $region33: #{tpu_custom_call.1} parent=31 // pred_check
          %p215 = pneg %p52
        $region34: #{tpu_custom_call.1} parent=31 // pred_check_branch
          %217 = sbr.rel (%p215) target = $region36
        $region35: #{tpu_custom_call.1} parent=31 // pred_region
          %218 = dma.done [#allocation5], 128
        $region36: #{tpu_custom_call.1} parent=31 // pred_fallthru
          _
        %s219 = sand.u32 %s67, 1
        %s220 = scalar_lea.sflag [#allocation3], %s219
        %s221 = sand.u32 %s67, 1
        %s222 = smul.addr %s221, 8
        %s223 = scalar_lea.vmem [#allocation6], %s222
        // Predicated region
        $region37: #{tpu_custom_call.1} parent=31 // pred_check
          %p224 = pneg %p80
        $region38: #{tpu_custom_call.1} parent=31 // pred_check_branch
          %226 = sbr.rel (%p224) target = $region40
        $region39: #{tpu_custom_call.1} parent=31 // pred_region
          %227 = dma.done %s220, 128
        $region40: #{tpu_custom_call.1} parent=31 // pred_fallthru
          _
        %s228 = sand.u32 %s95, 1
        %s229 = scalar_lea.sflag [#allocation8], %s228
        %s230 = sand.u32 %s95, 1
        %s231 = smul.addr %s230, 16
        %s232 = scalar_lea.vmem [#allocation7], %s231
        // Predicated region
        $region41: #{tpu_custom_call.1} parent=31 // pred_check
          %p233 = pneg %p108
        $region42: #{tpu_custom_call.1} parent=31 // pred_check_branch
          %235 = sbr.rel (%p233) target = $region44
        $region43: #{tpu_custom_call.1} parent=31 // pred_region
          %236 = dma.done %s229, 256
        $region44: #{tpu_custom_call.1} parent=31 // pred_fallthru
          _
        %237 = sfence
        %p238 = pneg %p52
        %p239 = pneg %p49
        %s240 = sand.u32 %s67, 1
        %s241 = scalar_lea.sflag [#allocation3], %s240
        %s242 = sand.u32 %s67, 1
        %s243 = smul.addr %s242, 8
        %s244 = scalar_lea.vmem [#allocation6], %s243
        %p245 = pneg %p80
        %p246 = pneg %p77
        %s247 = sand.u32 %s95, 1
        %s248 = scalar_lea.sflag [#allocation8], %s247
        %s249 = sand.u32 %s95, 1
        %s250 = smul.addr %s249, 16
        %s251 = scalar_lea.vmem [#allocation7], %s250
        %p252 = pneg %p108
        %p253 = pneg %p105
        %p254 = pneg %p136
        %p255 = pneg %p133
        %s256 = sand.u32 %s123, 1
        %s257 = scalar_lea.sflag [#allocation4], %s256
        %s258 = sand.u32 %s123, 1
        %s259 = smul.addr %s258, 10
        %s260 = scalar_lea.vmem [#allocation9], %s259
        %s261 = sld [smem:[#allocation2]]
        %v262 = vld [vmem:[%s223] sm:$0x3]
        %v263 = vstv %s261
        %v264 = vmul.f32 %v262, %v263
        %s265 = sld [smem:[#allocation2 + $0x1]]
        %s266 = scalar_lea.vmem %s223, 2 [#allocation6]
        %v267 = vld [vmem:[%s266] sm:$0x3]
        %v268 = vstv %s265
        %v269 = vmul.f32 %v267, %v268
        %v270 = vadd.f32 %v264, %v269
        %s271 = sld [smem:[#allocation2 + $0x2]]
        %s272 = scalar_lea.vmem %s223, 4 [#allocation6]
        %v273 = vld [vmem:[%s272] sm:$0x3]
        %v274 = vstv %s271
        %v275 = vmul.f32 %v273, %v274
        %v276 = vadd.f32 %v270, %v275
        %s277 = sld [smem:[#allocation2 + $0x3]]
        %s278 = scalar_lea.vmem %s223, 6 [#allocation6]
        %v279 = vld [vmem:[%s278] sm:$0x3]
        %v280 = vstv %s277
        %v281 = vmul.f32 %v279, %v280
        %v282 = vadd.f32 %v276, %v281
        %s283 = sld [smem:[#allocation2 + $0x4]]
        %v284 = vld [vmem:[%s232] sm:$0x3]
        %v285 = vstv %s283
        %v286 = vmul.f32 %v284, %v285
        %v287 = vadd.f32 %v282, %v286
        %s288 = sld [smem:[#allocation2 + $0x5]]
        %s289 = scalar_lea.vmem %s232, 2 [#allocation7]
        %v290 = vld [vmem:[%s289] sm:$0x3]
        %v291 = vstv %s288
        %v292 = vmul.f32 %v290, %v291
        %v293 = vadd.f32 %v287, %v292
        %s294 = sld [smem:[#allocation2 + $0x6]]
        %s295 = scalar_lea.vmem %s232, 4 [#allocation7]
        %v296 = vld [vmem:[%s295] sm:$0x3]
        %v297 = vstv %s294
        %v298 = vmul.f32 %v296, %v297
        %v299 = vadd.f32 %v293, %v298
        %s300 = sld [smem:[#allocation2 + $0x7]]
        %s301 = scalar_lea.vmem %s232, 6 [#allocation7]
        %v302 = vld [vmem:[%s301] sm:$0x3]
        %v303 = vstv %s300
        %v304 = vmul.f32 %v302, %v303
        %v305 = vadd.f32 %v299, %v304
        %s306 = sld [smem:[#allocation2 + $0x8]]
        %s307 = scalar_lea.vmem %s232, 8 [#allocation7]
        %v308 = vld [vmem:[%s307] sm:$0x3]
        %v309 = vstv %s306
        %v310 = vmul.f32 %v308, %v309
        %v311 = vadd.f32 %v305, %v310
        %s312 = sld [smem:[#allocation2 + $0x9]]
        %s313 = scalar_lea.vmem %s232, 10 [#allocation7]
        %v314 = vld [vmem:[%s313] sm:$0x3]
        %v315 = vstv %s312
        %v316 = vmul.f32 %v314, %v315
        %v317 = vadd.f32 %v311, %v316
        %s318 = sld [smem:[#allocation2 + $0xa]]
        %s319 = scalar_lea.vmem %s232, 12 [#allocation7]
        %v320 = vld [vmem:[%s319] sm:$0x3]
        %v321 = vstv %s318
        %v322 = vmul.f32 %v320, %v321
        %v323 = vadd.f32 %v317, %v322
        %s324 = sld [smem:[#allocation2 + $0xb]]
        %s325 = scalar_lea.vmem %s232, 14 [#allocation7]
        %v326 = vld [vmem:[%s325] sm:$0x3]
        %v327 = vstv %s324
        %v328 = vmul.f32 %v326, %v327
        %v329 = vadd.f32 %v323, %v328
        %s330 = sld [smem:[#allocation2 + $0xc]]
        %v331 = vstv %s330
        %v332 = vadd.f32 %v329, %v331
        %s333 = sld [smem:[#allocation2 + $0x80]]
        %v334 = vstv %s333
        %v335 = vmul.f32 %v262, %v334
        %s336 = sld [smem:[#allocation2 + $0x81]]
        %v337 = vstv %s336
        %v338 = vmul.f32 %v267, %v337
        %v339 = vadd.f32 %v335, %v338
        %s340 = sld [smem:[#allocation2 + $0x82]]
        %v341 = vstv %s340
        %v342 = vmul.f32 %v273, %v341
        %v343 = vadd.f32 %v339, %v342
        %s344 = sld [smem:[#allocation2 + $0x83]]
        %v345 = vstv %s344
        %v346 = vmul.f32 %v279, %v345
        %v347 = vadd.f32 %v343, %v346
        %s348 = sld [smem:[#allocation2 + $0x84]]
        %v349 = vstv %s348
        %v350 = vmul.f32 %v284, %v349
        %v351 = vadd.f32 %v347, %v350
        %s352 = sld [smem:[#allocation2 + $0x85]]
        %v353 = vstv %s352
        %v354 = vmul.f32 %v290, %v353
        %v355 = vadd.f32 %v351, %v354
        %s356 = sld [smem:[#allocation2 + $0x86]]
        %v357 = vstv %s356
        %v358 = vmul.f32 %v296, %v357
        %v359 = vadd.f32 %v355, %v358
        %s360 = sld [smem:[#allocation2 + $0x87]]
        %v361 = vstv %s360
        %v362 = vmul.f32 %v302, %v361
        %v363 = vadd.f32 %v359, %v362
        %s364 = sld [smem:[#allocation2 + $0x88]]
        %v365 = vstv %s364
        %v366 = vmul.f32 %v308, %v365
        %v367 = vadd.f32 %v363, %v366
        %s368 = sld [smem:[#allocation2 + $0x89]]
        %v369 = vstv %s368
        %v370 = vmul.f32 %v314, %v369
        %v371 = vadd.f32 %v367, %v370
        %s372 = sld [smem:[#allocation2 + $0x8a]]
        %v373 = vstv %s372
        %v374 = vmul.f32 %v320, %v373
        %v375 = vadd.f32 %v371, %v374
        %s376 = sld [smem:[#allocation2 + $0x8b]]
        %v377 = vstv %s376
        %v378 = vmul.f32 %v326, %v377
        %v379 = vadd.f32 %v375, %v378
        %s380 = sld [smem:[#allocation2 + $0x8c]]
        %v381 = vstv %s380
        %v382 = vadd.f32 %v379, %v381
        %s383 = sld [smem:[#allocation2 + $0x100]]
        %v384 = vstv %s383
        %v385 = vmul.f32 %v262, %v384
        %s386 = sld [smem:[#allocation2 + $0x101]]
        %v387 = vstv %s386
        %v388 = vmul.f32 %v267, %v387
        %v389 = vadd.f32 %v385, %v388
        %s390 = sld [smem:[#allocation2 + $0x102]]
        %v391 = vstv %s390
        %v392 = vmul.f32 %v273, %v391
        %v393 = vadd.f32 %v389, %v392
        %s394 = sld [smem:[#allocation2 + $0x103]]
        %v395 = vstv %s394
        %v396 = vmul.f32 %v279, %v395
        %v397 = vadd.f32 %v393, %v396
        %s398 = sld [smem:[#allocation2 + $0x104]]
        %v399 = vstv %s398
        %v400 = vmul.f32 %v284, %v399
        %v401 = vadd.f32 %v397, %v400
        %s402 = sld [smem:[#allocation2 + $0x105]]
        %v403 = vstv %s402
        %v404 = vmul.f32 %v290, %v403
        %v405 = vadd.f32 %v401, %v404
        %s406 = sld [smem:[#allocation2 + $0x106]]
        %v407 = vstv %s406
        %v408 = vmul.f32 %v296, %v407
        %v409 = vadd.f32 %v405, %v408
        %s410 = sld [smem:[#allocation2 + $0x107]]
        %v411 = vstv %s410
        %v412 = vmul.f32 %v302, %v411
        %v413 = vadd.f32 %v409, %v412
        %s414 = sld [smem:[#allocation2 + $0x108]]
        %v415 = vstv %s414
        %v416 = vmul.f32 %v308, %v415
        %v417 = vadd.f32 %v413, %v416
        %s418 = sld [smem:[#allocation2 + $0x109]]
        %v419 = vstv %s418
        %v420 = vmul.f32 %v314, %v419
        %v421 = vadd.f32 %v417, %v420
        %s422 = sld [smem:[#allocation2 + $0x10a]]
        %v423 = vstv %s422
        %v424 = vmul.f32 %v320, %v423
        %v425 = vadd.f32 %v421, %v424
        %s426 = sld [smem:[#allocation2 + $0x10b]]
        %v427 = vstv %s426
        %v428 = vmul.f32 %v326, %v427
        %v429 = vadd.f32 %v425, %v428
        %s430 = sld [smem:[#allocation2 + $0x10c]]
        %v431 = vstv %s430
        %v432 = vadd.f32 %v429, %v431
        %s433 = sld [smem:[#allocation2 + $0x180]]
        %v434 = vstv %s433
        %v435 = vmul.f32 %v262, %v434
        %s436 = sld [smem:[#allocation2 + $0x181]]
        %v437 = vstv %s436
        %v438 = vmul.f32 %v267, %v437
        %v439 = vadd.f32 %v435, %v438
        %s440 = sld [smem:[#allocation2 + $0x182]]
        %v441 = vstv %s440
        %v442 = vmul.f32 %v273, %v441
        %v443 = vadd.f32 %v439, %v442
        %s444 = sld [smem:[#allocation2 + $0x183]]
        %v445 = vstv %s444
        %v446 = vmul.f32 %v279, %v445
        %v447 = vadd.f32 %v443, %v446
        %s448 = sld [smem:[#allocation2 + $0x184]]
        %v449 = vstv %s448
        %v450 = vmul.f32 %v284, %v449
        %v451 = vadd.f32 %v447, %v450
        %s452 = sld [smem:[#allocation2 + $0x185]]
        %v453 = vstv %s452
        %v454 = vmul.f32 %v290, %v453
        %v455 = vadd.f32 %v451, %v454
        %s456 = sld [smem:[#allocation2 + $0x186]]
        %v457 = vstv %s456
        %v458 = vmul.f32 %v296, %v457
        %v459 = vadd.f32 %v455, %v458
        %s460 = sld [smem:[#allocation2 + $0x187]]
        %v461 = vstv %s460
        %v462 = vmul.f32 %v302, %v461
        %v463 = vadd.f32 %v459, %v462
        %s464 = sld [smem:[#allocation2 + $0x188]]
        %v465 = vstv %s464
        %v466 = vmul.f32 %v308, %v465
        %v467 = vadd.f32 %v463, %v466
        %s468 = sld [smem:[#allocation2 + $0x189]]
        %v469 = vstv %s468
        %v470 = vmul.f32 %v314, %v469
        %v471 = vadd.f32 %v467, %v470
        %s472 = sld [smem:[#allocation2 + $0x18a]]
        %v473 = vstv %s472
        %v474 = vmul.f32 %v320, %v473
        %v475 = vadd.f32 %v471, %v474
        %s476 = sld [smem:[#allocation2 + $0x18b]]
        %v477 = vstv %s476
        %v478 = vmul.f32 %v326, %v477
        %v479 = vadd.f32 %v475, %v478
        %s480 = sld [smem:[#allocation2 + $0x18c]]
        %v481 = vstv %s480
        %v482 = vadd.f32 %v479, %v481
        %s483 = sld [smem:[#allocation2 + $0x200]]
        %v484 = vstv %s483
        %v485 = vmul.f32 %v262, %v484
        %s486 = sld [smem:[#allocation2 + $0x201]]
        %v487 = vstv %s486
        %v488 = vmul.f32 %v267, %v487
        %v489 = vadd.f32 %v485, %v488
        %s490 = sld [smem:[#allocation2 + $0x202]]
        %v491 = vstv %s490
        %v492 = vmul.f32 %v273, %v491
        %v493 = vadd.f32 %v489, %v492
        %s494 = sld [smem:[#allocation2 + $0x203]]
        %v495 = vstv %s494
        %v496 = vmul.f32 %v279, %v495
        %v497 = vadd.f32 %v493, %v496
        %s498 = sld [smem:[#allocation2 + $0x204]]
        %v499 = vstv %s498
        %v500 = vmul.f32 %v284, %v499
        %v501 = vadd.f32 %v497, %v500
        %s502 = sld [smem:[#allocation2 + $0x205]]
        %v503 = vstv %s502
        %v504 = vmul.f32 %v290, %v503
        %v505 = vadd.f32 %v501, %v504
        %s506 = sld [smem:[#allocation2 + $0x206]]
        %v507 = vstv %s506
        %v508 = vmul.f32 %v296, %v507
        %v509 = vadd.f32 %v505, %v508
        %s510 = sld [smem:[#allocation2 + $0x207]]
        %v511 = vstv %s510
        %v512 = vmul.f32 %v302, %v511
        %v513 = vadd.f32 %v509, %v512
        %s514 = sld [smem:[#allocation2 + $0x208]]
        %v515 = vstv %s514
        %v516 = vmul.f32 %v308, %v515
        %v517 = vadd.f32 %v513, %v516
        %s518 = sld [smem:[#allocation2 + $0x209]]
        %v519 = vstv %s518
        %v520 = vmul.f32 %v314, %v519
        %v521 = vadd.f32 %v517, %v520
        %s522 = sld [smem:[#allocation2 + $0x20a]]
        %v523 = vstv %s522
        %v524 = vmul.f32 %v320, %v523
        %v525 = vadd.f32 %v521, %v524
        %s526 = sld [smem:[#allocation2 + $0x20b]]
        %v527 = vstv %s526
        %v528 = vmul.f32 %v326, %v527
        %v529 = vadd.f32 %v525, %v528
        %s530 = sld [smem:[#allocation2 + $0x20c]]
        %v531 = vstv %s530
        %v532 = vadd.f32 %v529, %v531
        %v533 = vmax.f32 %v332, %v382
        %v534 = vmax.f32 %v533, %v432
        %v535 = vmax.f32 %v534, %v482
        %v536 = vmax.f32 %v535, %v532
        %v537 = vsub.f32 %v332, %v536
        %v538 = vmul.f32 %v537, 1.442695
        %v539 = vpow.pop %v538
        %v540 = vsub.f32 %v382, %v536
        %v541 = vmul.f32 %v540, 1.442695
        %v542 = vpow.pop %v541
        %v543 = vsub.f32 %v432, %v536
        %v544 = vmul.f32 %v543, 1.442695
        %v545 = vpow.pop %v544
        %v546 = vsub.f32 %v482, %v536
        %v547 = vmul.f32 %v546, 1.442695
        %v548 = vpow.pop %v547
        %v549 = vsub.f32 %v532, %v536
        %v550 = vmul.f32 %v549, 1.442695
        %v551 = vpow.pop %v550
        %v552 = vadd.f32 %v539, %v542
        %v553 = vadd.f32 %v552, %v545
        %v554 = vadd.f32 %v553, %v548
        %v555 = vadd.f32 %v554, %v551
        %v556 = vrcp.pop %v555
        %v557 = vmul.f32 %v539, %v556
        %558 = vst [vmem:[%s260] sm:$0x3] %v557
        %v559 = vmul.f32 %v542, %v556
        %s560 = scalar_lea.vmem %s260, 2 [#allocation9]
        %561 = vst [vmem:[%s560] sm:$0x3] %v559
        %v562 = vmul.f32 %v545, %v556
        %s563 = scalar_lea.vmem %s260, 4 [#allocation9]
        %564 = vst [vmem:[%s563] sm:$0x3] %v562
        %v565 = vmul.f32 %v548, %v556
        %s566 = scalar_lea.vmem %s260, 6 [#allocation9]
        %567 = vst [vmem:[%s566] sm:$0x3] %v565
        %v568 = vmul.f32 %v551, %v556
        %s569 = scalar_lea.vmem %s260, 8 [#allocation9]
        %570 = vst [vmem:[%s569] sm:$0x3] %v568
        %s571 = sand.u32 %s123, 1
        %s572 = scalar_lea.sflag [#allocation4], %s571
        %s573 = sand.u32 %s123, 1
        %s574 = smul.addr %s573, 10
        %s575 = scalar_lea.vmem [#allocation9], %s574
        // Predicated region
        $region45: #{tpu_custom_call.1} parent=31 // pred_check
          %p576 = pneg %p133
        $region46: #{tpu_custom_call.1} parent=31 // pred_check_branch
          %578 = sbr.rel (%p576) target = $region48
        $region47: #{tpu_custom_call.1} parent=31 // pred_region
          %s580 = ssub.s32 160, 160
          %581 = vsyncadd %s572, %s580
          %s582 = smul.addr %s28, 5
          %s583 = sadd.s32 %s29, %s582
          %s584 = smul.addr %s583, 32
          %s585 = scalar_lea.hbm %s3, %s584
          %s586 = sshll.u32 %s575, 4
          %s587 = int_to_ptr.vmem [resolvable:$true] %s586
          %592 = dma.vmem_to_hbm [thread:$0]  %s587, 160, %s585, %s572, 32, 32, 2
        $region48: #{tpu_custom_call.1} parent=31 // pred_fallthru
          _
      $region32: #{tpu_custom_call.1} parent=5 // pred_fallthru
        _
      %p593 = scmp.le.s32.totalorder 2, %s19
      // Predicated region
      $region49: #{tpu_custom_call.1} parent=5 // pred_check
        %p594 = pneg %p593
      $region50: #{tpu_custom_call.1} parent=5 // pred_check_branch
        %596 = sbr.rel (%p594) target = $region52
      $region51: #{tpu_custom_call.1} parent=5 // pred_region
        %s597 = ssub.s32 %s19, 2
        // Predicated region
        $region53: #{tpu_custom_call.1} parent=51 // pred_check
          %p598 = pneg %p139
        $region54: #{tpu_custom_call.1} parent=51 // pred_check_branch
          %600 = sbr.rel (%p598) target = $region56
        $region55: #{tpu_custom_call.1} parent=51 // pred_region
          %s601 = sand.u32 %s124, 1
          %s602 = scalar_lea.sflag [#allocation4], %s601
          %s603 = sand.u32 %s124, 1
          %s604 = smul.addr %s603, 10
          %s605 = scalar_lea.vmem [#allocation9], %s604
          %606 = dma.done %s602, 160
        $region56: #{tpu_custom_call.1} parent=51 // pred_fallthru
          _
      $region52: #{tpu_custom_call.1} parent=5 // pred_fallthru
        _
    $region6: #{tpu_custom_call.1} parent=1 // loop_footer
      %s23 = sadd.s32 1, %s19
    $region7: #{tpu_custom_call.1} parent=1 // loop_footer_branch
      %18 = sbr.rel target = $region3
    $region8: #{tpu_custom_call.1} parent=1 // loop_exit
      _
    %607 = vsyncpa [#allocation3], 1
    %s608 = scalar_lea.sflag [#allocation3], 1
    %609 = vsyncpa %s608, 1
    %610 = vsyncpa [#allocation8], 1
    %s611 = scalar_lea.sflag [#allocation8], 1
    %612 = vsyncpa %s611, 1
    %613 = vsyncpa [#allocation4], 1
    %s614 = scalar_lea.sflag [#allocation4], 1
    %615 = vsyncpa %s614, 1
    %616 = vsyncpa [#allocation5], 1
    %s617 = scalar_lea.sflag [#allocation5], 1
    %618 = vsyncpa %s617, 1

</llo_original>
